<compile_context>
chip_gen: v7x
topology: tpu7x:2x2x1
jax: 0.10.0
libtpu: 0.0.40
codegen_flags: <defaults>
</compile_context>

<pallas_src>
import jax
import jax.numpy as jnp
from jax.experimental import pallas as pl
from jax.experimental.pallas import tpu as pltpu


def _round_up(x, m):
    return ((x + m - 1) // m) * m


def _det_partials_kernel(coef_ref, qlen_ref, c_ref, gc_ref, b_ref, gb_ref,
                         ce_num_ref, ce_den_ref, giou_ref, l1_ref, cnt_ref):
    B, TQ, C = c_ref.shape
    qi = pl.program_id(0)

    no_obj_w = coef_ref[0]          # scalar f32 (weight for class 0)
    q_valid = qlen_ref[0]           # scalar i32 (true, unpadded Q)

    # validity mask for padded queries of this tile
    q_idx = jax.lax.broadcasted_iota(jnp.int32, (B, TQ), 1) + qi * TQ
    valid = (q_idx < q_valid).astype(jnp.float32)                    # (B, TQ)

    gc = gc_ref[...]                                                 # (B, TQ) i32
    c = c_ref[...].astype(jnp.float32)                               # (B, TQ, C)

    # ---- weighted cross entropy (no one-hot materialization) ----
    m = jnp.max(c, axis=-1)                                          # (B, TQ)
    lse = m + jnp.log(jnp.sum(jnp.exp(c - m[..., None]), axis=-1))   # (B, TQ)
    cls_iota = jax.lax.broadcasted_iota(jnp.int32, (B, TQ, C), 2)
    logit_t = jnp.sum(jnp.where(cls_iota == gc[..., None], c, 0.0), axis=-1)
    nll = lse - logit_t                                              # (B, TQ)
    w = jnp.where(gc == 0, no_obj_w, 1.0) * valid                    # per-elem class weight
    ce_num = jnp.sum(w * nll, axis=-1, keepdims=True)                # (B, 1)
    ce_den = jnp.sum(w, axis=-1, keepdims=True)                      # (B, 1)

    # ---- boxes: coord-major (4, B, TQ); leading-dim slices are free ----
    bx = [b_ref[k].astype(jnp.float32) for k in range(4)]            # cx, cy, w, h
    gx = [gb_ref[k].astype(jnp.float32) for k in range(4)]
    inst = (gc != 0).astype(jnp.float32) * valid                     # (B, TQ)

    def xyxy(v):
        cx, cy, wd, ht = v
        return cx - wd * 0.5, cy - ht * 0.5, cx + wd * 0.5, cy + ht * 0.5

    x1a, y1a, x2a, y2a = xyxy(bx)
    x1b, y1b, x2b, y2b = xyxy(gx)
    area_a = (x2a - x1a) * (y2a - y1a)
    area_b = (x2b - x1b) * (y2b - y1b)
    inter = (jnp.maximum(jnp.minimum(x2a, x2b) - jnp.maximum(x1a, x1b), 0.0) *
             jnp.maximum(jnp.minimum(y2a, y2b) - jnp.maximum(y1a, y1b), 0.0))
    union = area_a + area_b - inter
    enclose = ((jnp.maximum(x2a, x2b) - jnp.minimum(x1a, x1b)) *
               (jnp.maximum(y2a, y2b) - jnp.minimum(y1a, y1b)))
    # TODO(synk): exact divides kept (not pl.reciprocal approx) to preserve
    # reference-level accuracy; flip if ~1e-3 relative loss error is acceptable.
    giou = inter / union - (enclose - union) / enclose
    giou_sum = jnp.sum((1.0 - giou) * inst, axis=-1, keepdims=True)  # (B, 1)

    l1_per = (jnp.abs(bx[0] - gx[0]) + jnp.abs(bx[1] - gx[1]) +
              jnp.abs(bx[2] - gx[2]) + jnp.abs(bx[3] - gx[3])) * 0.25
    l1_sum = jnp.sum(l1_per * inst, axis=-1, keepdims=True)          # (B, 1)

    cnt = jnp.sum(inst, axis=-1, keepdims=True)                      # (B, 1)

    # lane-dense, unmasked (B, 128) per-tile partial stores
    ce_num_ref[0] = jnp.broadcast_to(ce_num, (B, 128))
    ce_den_ref[0] = jnp.broadcast_to(ce_den, (B, 128))
    giou_ref[0] = jnp.broadcast_to(giou_sum, (B, 128))
    l1_ref[0] = jnp.broadcast_to(l1_sum, (B, 128))
    cnt_ref[0] = jnp.broadcast_to(cnt, (B, 128))


def det_criterion_pallas(c, gc, b, gb, no_instance_coef,
                         *, max_block_bytes=4 * 1024 * 1024):
    """c:(B,Q,C) float, gc:(B,Q) int, b/gb:(B,Q,4) float (cx,cy,w,h)."""
    B, Q, C = c.shape
    gc = gc.astype(jnp.int32)

    # Query-tile size: largest multiple of 128 whose logits block fits the
    # budget (keeps 2x double-buffered blocks well inside scoped VMEM on
    # v5e/v6e and v7x's smaller 64 MiB VMEM).
    bytes_per_q = max(B * C * 4, 1)
    tq_cap = max(128, (max_block_bytes // bytes_per_q) // 128 * 128)
    TQ = min(_round_up(Q, 128), tq_cap)
    Q_pad = _round_up(Q, TQ)
    num_tiles = Q_pad // TQ

    pad_q = Q_pad - Q
    if pad_q:
        c = jnp.pad(c, ((0, 0), (0, pad_q), (0, 0)))
        gc = jnp.pad(gc, ((0, 0), (0, pad_q)))
        # pad boxes with unit boxes so the (masked-out) GIoU math stays finite
        b = jnp.pad(b, ((0, 0), (0, pad_q), (0, 0)), constant_values=1.0)
        gb = jnp.pad(gb, ((0, 0), (0, pad_q), (0, 0)), constant_values=1.0)

    # coord-major layout: (4, B, Q_pad)
    b_cf = jnp.transpose(b, (2, 0, 1))
    gb_cf = jnp.transpose(gb, (2, 0, 1))

    coef = jnp.array([no_instance_coef], dtype=jnp.float32)
    qlen = jnp.array([Q], dtype=jnp.int32)

    part_shape = jax.ShapeDtypeStruct((num_tiles, B, 128), jnp.float32)
    out_spec = pl.BlockSpec((1, B, 128), lambda qi: (qi, 0, 0))

    cost = pl.CostEstimate(
        flops=int(8 * B * Q_pad * C + 96 * B * Q_pad),
        transcendentals=int(B * Q_pad * (C + 1)),
        bytes_accessed=int(B * Q_pad * C * c.dtype.itemsize
                           + B * Q_pad * 4
                           + 2 * 4 * B * Q_pad * b_cf.dtype.itemsize
                           + 5 * num_tiles * B * 128 * 4),
    )

    kernel = pl.pallas_call(
        _det_partials_kernel,
        grid=(num_tiles,),
        in_specs=[
            pl.BlockSpec(memory_space=pltpu.SMEM),             # no-object coef
            pl.BlockSpec(memory_space=pltpu.SMEM),             # true Q
            pl.BlockSpec((B, TQ, C), lambda qi: (0, qi, 0)),    # logits
            pl.BlockSpec((B, TQ), lambda qi: (0, qi)),          # class targets
            pl.BlockSpec((4, B, TQ), lambda qi: (0, 0, qi)),    # pred boxes
            pl.BlockSpec((4, B, TQ), lambda qi: (0, 0, qi)),    # gt boxes
        ],
        out_specs=(out_spec,) * 5,
        out_shape=(part_shape,) * 5,
        compiler_params=pltpu.CompilerParams(
            dimension_semantics=("parallel",),
        ),
        cost_estimate=cost,
    )

    ce_num_t, ce_den_t, giou_t, l1_t, cnt_t = kernel(coef, qlen, c, gc, b_cf, gb_cf)

    # tiny final reduce (over tiles, then batch) in plain JAX
    cla_loss = jnp.sum(ce_num_t[:, :, 0]) / jnp.sum(ce_den_t[:, :, 0])
    n_inst = jnp.sum(cnt_t[:, :, 0], axis=0)                    # (B,)
    giou_loss = jnp.mean(jnp.sum(giou_t[:, :, 0], axis=0) / n_inst)
    l1_loss = jnp.mean(jnp.sum(l1_t[:, :, 0], axis=0) / n_inst)
    return cla_loss, giou_loss, l1_loss


def det_criterion_ref(c, gc, b, gb, no_instance_coef):
    """Pure-JAX reference mirroring the PyTorch module."""
    logp = jax.nn.log_softmax(c, axis=-1)
    nll = -jnp.take_along_axis(logp, gc[..., None], axis=-1)[..., 0]
    w = jnp.where(gc == 0, no_instance_coef, 1.0)
    cla_loss = jnp.sum(w * nll) / jnp.sum(w)

    mask = (gc != 0).astype(jnp.float32)
    n_inst = jnp.sum(mask, axis=-1)

    def xyxy(box):
        cx, cy, ww, hh = box[..., 0], box[..., 1], box[..., 2], box[..., 3]
        return cx - ww / 2, cy - hh / 2, cx + ww / 2, cy + hh / 2

    x1a, y1a, x2a, y2a = xyxy(b)
    x1b, y1b, x2b, y2b = xyxy(gb)
    area_a = (x2a - x1a) * (y2a - y1a)
    area_b = (x2b - x1b) * (y2b - y1b)
    inter = (jnp.maximum(jnp.minimum(x2a, x2b) - jnp.maximum(x1a, x1b), 0.0) *
             jnp.maximum(jnp.minimum(y2a, y2b) - jnp.maximum(y1a, y1b), 0.0))
    union = area_a + area_b - inter
    enclose = ((jnp.maximum(x2a, x2b) - jnp.minimum(x1a, x1b)) *
               (jnp.maximum(y2a, y2b) - jnp.minimum(y1a, y1b)))
    giou = inter / union - (enclose - union) / enclose
    giou_loss = jnp.mean(jnp.sum((1.0 - giou) * mask, axis=-1) / n_inst)

    l1 = jnp.mean(jnp.abs(b - gb), axis=-1) * mask
    l1_loss = jnp.mean(jnp.sum(l1, axis=-1) / n_inst)
    return cla_loss, giou_loss, l1_loss


if __name__ == "__main__":
    key = jax.random.PRNGKey(0)
    k1, k2, k3, k4 = jax.random.split(key, 4)

    B, Q, C = 2, 8, 8
    no_instance_coef = 0.1

    c = jax.random.normal(k1, (B, Q, C), dtype=jnp.float32)
    gc = jax.random.randint(k2, (B, Q), 0, C, dtype=jnp.int32)
    # guarantee at least one instance per batch element (avoids 0-division,
    # matching sane training data)
    gc = gc.at[:, 0].set(jnp.maximum(gc[:, 0], 1))

    # boxes as normalized (cx, cy, w, h) with positive w, h
    b = jnp.concatenate(
        [jax.random.uniform(k3, (B, Q, 2), minval=0.2, maxval=0.8),
         jax.random.uniform(k3, (B, Q, 2), minval=0.1, maxval=0.4)], axis=-1)
    gb = jnp.concatenate(
        [jax.random.uniform(k4, (B, Q, 2), minval=0.2, maxval=0.8),
         jax.random.uniform(k4, (B, Q, 2), minval=0.1, maxval=0.4)], axis=-1)

    cla_loss, giou_loss, l1_loss = det_criterion_pallas(c, gc, b, gb, no_instance_coef)
    jax.block_until_ready((cla_loss, giou_loss, l1_loss))

    cla_r, giou_r, l1_r = det_criterion_ref(c, gc, b, gb, no_instance_coef)
    assert jnp.allclose(cla_loss, cla_r, rtol=1e-4, atol=1e-5), (cla_loss, cla_r)
    assert jnp.allclose(giou_loss, giou_r, rtol=1e-4, atol=1e-5), (giou_loss, giou_r)
    assert jnp.allclose(l1_loss, l1_r, rtol=1e-4, atol=1e-5), (l1_loss, l1_r)

    print("KERNEL_OK")
</pallas_src>

<mosaic_0001>
module attributes {stable_mosaic.version = 11 : i64} {
  func.func @_det_partials_kernel(%arg0: i32, %arg1: memref<1xf32, #tpu.memory_space<smem>>, %arg2: memref<1xi32, #tpu.memory_space<smem>>, %arg3: memref<2x128x8xf32, #tpu.memory_space<vmem>>, %arg4: memref<2x128xi32, #tpu.memory_space<vmem>>, %arg5: memref<4x2x128xf32, #tpu.memory_space<vmem>>, %arg6: memref<4x2x128xf32, #tpu.memory_space<vmem>>, %arg7: memref<1x2x128xf32, #tpu.memory_space<vmem>>, %arg8: memref<1x2x128xf32, #tpu.memory_space<vmem>>, %arg9: memref<1x2x128xf32, #tpu.memory_space<vmem>>, %arg10: memref<1x2x128xf32, #tpu.memory_space<vmem>>, %arg11: memref<1x2x128xf32, #tpu.memory_space<vmem>>) attributes {dimension_semantics = [#tpu.dimension_semantics<parallel>], iteration_bounds = array<i64: 1>, scalar_prefetch = 0 : i64, scratch_operands = 0 : i64, tpu.core_type = #tpu.core_type<tc>, window_params = [{transform_indices = @transform_0, window_bounds = array<i64: 1>}, {transform_indices = @transform_1, window_bounds = array<i64: 1>}, {transform_indices = @transform_2, window_bounds = array<i64: 2, 128, 8>}, {transform_indices = @transform_3, window_bounds = array<i64: 2, 128>}, {transform_indices = @transform_4, window_bounds = array<i64: 4, 2, 128>}, {transform_indices = @transform_5, window_bounds = array<i64: 4, 2, 128>}, {transform_indices = @transform_6, window_bounds = array<i64: 1, 2, 128>}, {transform_indices = @transform_7, window_bounds = array<i64: 1, 2, 128>}, {transform_indices = @transform_8, window_bounds = array<i64: 1, 2, 128>}, {transform_indices = @transform_9, window_bounds = array<i64: 1, 2, 128>}, {transform_indices = @transform_10, window_bounds = array<i64: 1, 2, 128>}]} {
    %c0 = arith.constant 0 : index
    %0 = memref.load %arg1[%c0] : memref<1xf32, #tpu.memory_space<smem>>
    %c0_0 = arith.constant 0 : index
    %1 = memref.load %arg2[%c0_0] : memref<1xi32, #tpu.memory_space<smem>>
    %2 = tpu.iota {dimensions = array<i32: 1>} : vector<2x128xi32>
    %c128_i32 = arith.constant 128 : i32
    %3 = arith.muli %arg0, %c128_i32 : i32
    %4 = vector.broadcast %3 : i32 to vector<2x128xi32>
    %5 = arith.addi %2, %4 : vector<2x128xi32>
    %6 = vector.broadcast %1 : i32 to vector<2x128xi32>
    %7 = arith.cmpi slt, %5, %6 : vector<2x128xi32>
    %8 = arith.extui %7 : vector<2x128xi1> to vector<2x128xi32>
    %9 = arith.sitofp %8 : vector<2x128xi32> to vector<2x128xf32>
    %c0_1 = arith.constant 0 : index
    %c0_2 = arith.constant 0 : index
    %10 = vector.load %arg4[%c0_1, %c0_2] : memref<2x128xi32, #tpu.memory_space<vmem>>, vector<2x128xi32>
    %c0_3 = arith.constant 0 : index
    %c0_4 = arith.constant 0 : index
    %c0_5 = arith.constant 0 : index
    %11 = vector.load %arg3[%c0_3, %c0_4, %c0_5] : memref<2x128x8xf32, #tpu.memory_space<vmem>>, vector<2x128x8xf32>
    %cst = arith.constant dense<0xFF800000> : vector<2x128xf32>
    %12 = vector.multi_reduction <maximumf>, %11, %cst [2] : vector<2x128x8xf32> to vector<2x128xf32>
    %13 = vector.shape_cast %12 : vector<2x128xf32> to vector<2x128x1xf32>
    %14 = vector.broadcast %13 : vector<2x128x1xf32> to vector<2x128x8xf32>
    %15 = arith.subf %11, %14 : vector<2x128x8xf32>
    %16 = math.exp %15 : vector<2x128x8xf32>
    %cst_6 = arith.constant dense<0.000000e+00> : vector<2x128xf32>
    %17 = vector.multi_reduction <add>, %16, %cst_6 [2] : vector<2x128x8xf32> to vector<2x128xf32>
    %18 = math.log %17 : vector<2x128xf32>
    %19 = arith.addf %12, %18 : vector<2x128xf32>
    %20 = tpu.iota {dimensions = array<i32: 2>} : vector<2x128x8xi32>
    %21 = vector.shape_cast %10 : vector<2x128xi32> to vector<2x128x1xi32>
    %22 = vector.broadcast %21 : vector<2x128x1xi32> to vector<2x128x8xi32>
    %23 = arith.cmpi eq, %20, %22 : vector<2x128x8xi32>
    %cst_7 = arith.constant 0.000000e+00 : f32
    %24 = vector.broadcast %cst_7 : f32 to vector<2x128x8xf32>
    %25 = arith.select %23, %11, %24 : vector<2x128x8xi1>, vector<2x128x8xf32>
    %cst_8 = arith.constant dense<0.000000e+00> : vector<2x128xf32>
    %26 = vector.multi_reduction <add>, %25, %cst_8 [2] : vector<2x128x8xf32> to vector<2x128xf32>
    %27 = arith.subf %19, %26 : vector<2x128xf32>
    %c0_i32 = arith.constant 0 : i32
    %28 = vector.broadcast %c0_i32 : i32 to vector<2x128xi32>
    %29 = arith.cmpi eq, %10, %28 : vector<2x128xi32>
    %cst_9 = arith.constant 1.000000e+00 : f32
    %30 = vector.broadcast %0 : f32 to vector<2x128xf32>
    %31 = vector.broadcast %cst_9 : f32 to vector<2x128xf32>
    %32 = arith.select %29, %30, %31 : vector<2x128xi1>, vector<2x128xf32>
    %33 = arith.mulf %32, %9 : vector<2x128xf32>
    %34 = arith.mulf %33, %27 : vector<2x128xf32>
    %cst_10 = arith.constant dense<0.000000e+00> : vector<2xf32>
    %35 = vector.multi_reduction <add>, %34, %cst_10 [1] : vector<2x128xf32> to vector<2xf32>
    %36 = vector.shape_cast %35 : vector<2xf32> to vector<2x1xf32>
    %cst_11 = arith.constant dense<0.000000e+00> : vector<2xf32>
    %37 = vector.multi_reduction <add>, %33, %cst_11 [1] : vector<2x128xf32> to vector<2xf32>
    %38 = vector.shape_cast %37 : vector<2xf32> to vector<2x1xf32>
    %c0_12 = arith.constant 0 : index
    %c0_13 = arith.constant 0 : index
    %c0_14 = arith.constant 0 : index
    %39 = vector.load %arg5[%c0_12, %c0_13, %c0_14] : memref<4x2x128xf32, #tpu.memory_space<vmem>>, vector<1x2x128xf32>
    %40 = vector.shape_cast %39 : vector<1x2x128xf32> to vector<2x128xf32>
    %c1 = arith.constant 1 : index
    %c0_15 = arith.constant 0 : index
    %c0_16 = arith.constant 0 : index
    %41 = vector.load %arg5[%c1, %c0_15, %c0_16] : memref<4x2x128xf32, #tpu.memory_space<vmem>>, vector<1x2x128xf32>
    %42 = vector.shape_cast %41 : vector<1x2x128xf32> to vector<2x128xf32>
    %c2 = arith.constant 2 : index
    %c0_17 = arith.constant 0 : index
    %c0_18 = arith.constant 0 : index
    %43 = vector.load %arg5[%c2, %c0_17, %c0_18] : memref<4x2x128xf32, #tpu.memory_space<vmem>>, vector<1x2x128xf32>
    %44 = vector.shape_cast %43 : vector<1x2x128xf32> to vector<2x128xf32>
    %c3 = arith.constant 3 : index
    %c0_19 = arith.constant 0 : index
    %c0_20 = arith.constant 0 : index
    %45 = vector.load %arg5[%c3, %c0_19, %c0_20] : memref<4x2x128xf32, #tpu.memory_space<vmem>>, vector<1x2x128xf32>
    %46 = vector.shape_cast %45 : vector<1x2x128xf32> to vector<2x128xf32>
    %c0_21 = arith.constant 0 : index
    %c0_22 = arith.constant 0 : index
    %c0_23 = arith.constant 0 : index
    %47 = vector.load %arg6[%c0_21, %c0_22, %c0_23] : memref<4x2x128xf32, #tpu.memory_space<vmem>>, vector<1x2x128xf32>
    %48 = vector.shape_cast %47 : vector<1x2x128xf32> to vector<2x128xf32>
    %c1_24 = arith.constant 1 : index
    %c0_25 = arith.constant 0 : index
    %c0_26 = arith.constant 0 : index
    %49 = vector.load %arg6[%c1_24, %c0_25, %c0_26] : memref<4x2x128xf32, #tpu.memory_space<vmem>>, vector<1x2x128xf32>
    %50 = vector.shape_cast %49 : vector<1x2x128xf32> to vector<2x128xf32>
    %c2_27 = arith.constant 2 : index
    %c0_28 = arith.constant 0 : index
    %c0_29 = arith.constant 0 : index
    %51 = vector.load %arg6[%c2_27, %c0_28, %c0_29] : memref<4x2x128xf32, #tpu.memory_space<vmem>>, vector<1x2x128xf32>
    %52 = vector.shape_cast %51 : vector<1x2x128xf32> to vector<2x128xf32>
    %c3_30 = arith.constant 3 : index
    %c0_31 = arith.constant 0 : index
    %c0_32 = arith.constant 0 : index
    %53 = vector.load %arg6[%c3_30, %c0_31, %c0_32] : memref<4x2x128xf32, #tpu.memory_space<vmem>>, vector<1x2x128xf32>
    %54 = vector.shape_cast %53 : vector<1x2x128xf32> to vector<2x128xf32>
    %c0_i32_33 = arith.constant 0 : i32
    %55 = vector.broadcast %c0_i32_33 : i32 to vector<2x128xi32>
    %56 = arith.cmpi ne, %10, %55 : vector<2x128xi32>
    %57 = arith.extui %56 : vector<2x128xi1> to vector<2x128xi32>
    %58 = arith.sitofp %57 : vector<2x128xi32> to vector<2x128xf32>
    %59 = arith.mulf %58, %9 : vector<2x128xf32>
    %cst_34 = arith.constant 5.000000e-01 : f32
    %60 = vector.broadcast %cst_34 : f32 to vector<2x128xf32>
    %61 = arith.mulf %44, %60 : vector<2x128xf32>
    %62 = arith.subf %40, %61 : vector<2x128xf32>
    %cst_35 = arith.constant 5.000000e-01 : f32
    %63 = vector.broadcast %cst_35 : f32 to vector<2x128xf32>
    %64 = arith.mulf %46, %63 : vector<2x128xf32>
    %65 = arith.subf %42, %64 : vector<2x128xf32>
    %cst_36 = arith.constant 5.000000e-01 : f32
    %66 = vector.broadcast %cst_36 : f32 to vector<2x128xf32>
    %67 = arith.mulf %44, %66 : vector<2x128xf32>
    %68 = arith.addf %40, %67 : vector<2x128xf32>
    %cst_37 = arith.constant 5.000000e-01 : f32
    %69 = vector.broadcast %cst_37 : f32 to vector<2x128xf32>
    %70 = arith.mulf %46, %69 : vector<2x128xf32>
    %71 = arith.addf %42, %70 : vector<2x128xf32>
    %cst_38 = arith.constant 5.000000e-01 : f32
    %72 = vector.broadcast %cst_38 : f32 to vector<2x128xf32>
    %73 = arith.mulf %52, %72 : vector<2x128xf32>
    %74 = arith.subf %48, %73 : vector<2x128xf32>
    %cst_39 = arith.constant 5.000000e-01 : f32
    %75 = vector.broadcast %cst_39 : f32 to vector<2x128xf32>
    %76 = arith.mulf %54, %75 : vector<2x128xf32>
    %77 = arith.subf %50, %76 : vector<2x128xf32>
    %cst_40 = arith.constant 5.000000e-01 : f32
    %78 = vector.broadcast %cst_40 : f32 to vector<2x128xf32>
    %79 = arith.mulf %52, %78 : vector<2x128xf32>
    %80 = arith.addf %48, %79 : vector<2x128xf32>
    %cst_41 = arith.constant 5.000000e-01 : f32
    %81 = vector.broadcast %cst_41 : f32 to vector<2x128xf32>
    %82 = arith.mulf %54, %81 : vector<2x128xf32>
    %83 = arith.addf %50, %82 : vector<2x128xf32>
    %84 = arith.subf %68, %62 : vector<2x128xf32>
    %85 = arith.subf %71, %65 : vector<2x128xf32>
    %86 = arith.mulf %84, %85 : vector<2x128xf32>
    %87 = arith.subf %80, %74 : vector<2x128xf32>
    %88 = arith.subf %83, %77 : vector<2x128xf32>
    %89 = arith.mulf %87, %88 : vector<2x128xf32>
    %90 = arith.minimumf %68, %80 : vector<2x128xf32>
    %91 = arith.maximumf %62, %74 : vector<2x128xf32>
    %92 = arith.subf %90, %91 : vector<2x128xf32>
    %cst_42 = arith.constant 0.000000e+00 : f32
    %93 = vector.broadcast %cst_42 : f32 to vector<2x128xf32>
    %94 = arith.maximumf %92, %93 : vector<2x128xf32>
    %95 = arith.minimumf %71, %83 : vector<2x128xf32>
    %96 = arith.maximumf %65, %77 : vector<2x128xf32>
    %97 = arith.subf %95, %96 : vector<2x128xf32>
    %cst_43 = arith.constant 0.000000e+00 : f32
    %98 = vector.broadcast %cst_43 : f32 to vector<2x128xf32>
    %99 = arith.maximumf %97, %98 : vector<2x128xf32>
    %100 = arith.mulf %94, %99 : vector<2x128xf32>
    %101 = arith.addf %86, %89 : vector<2x128xf32>
    %102 = arith.subf %101, %100 : vector<2x128xf32>
    %103 = arith.maximumf %68, %80 : vector<2x128xf32>
    %104 = arith.minimumf %62, %74 : vector<2x128xf32>
    %105 = arith.subf %103, %104 : vector<2x128xf32>
    %106 = arith.maximumf %71, %83 : vector<2x128xf32>
    %107 = arith.minimumf %65, %77 : vector<2x128xf32>
    %108 = arith.subf %106, %107 : vector<2x128xf32>
    %109 = arith.mulf %105, %108 : vector<2x128xf32>
    %110 = arith.divf %100, %102 : vector<2x128xf32>
    %111 = arith.subf %109, %102 : vector<2x128xf32>
    %112 = arith.divf %111, %109 : vector<2x128xf32>
    %113 = arith.subf %110, %112 : vector<2x128xf32>
    %cst_44 = arith.constant 1.000000e+00 : f32
    %114 = vector.broadcast %cst_44 : f32 to vector<2x128xf32>
    %115 = arith.subf %114, %113 : vector<2x128xf32>
    %116 = arith.mulf %115, %59 : vector<2x128xf32>
    %cst_45 = arith.constant dense<0.000000e+00> : vector<2xf32>
    %117 = vector.multi_reduction <add>, %116, %cst_45 [1] : vector<2x128xf32> to vector<2xf32>
    %118 = vector.shape_cast %117 : vector<2xf32> to vector<2x1xf32>
    %119 = arith.subf %40, %48 : vector<2x128xf32>
    %120 = math.absf %119 : vector<2x128xf32>
    %121 = arith.subf %42, %50 : vector<2x128xf32>
    %122 = math.absf %121 : vector<2x128xf32>
    %123 = arith.addf %120, %122 : vector<2x128xf32>
    %124 = arith.subf %44, %52 : vector<2x128xf32>
    %125 = math.absf %124 : vector<2x128xf32>
    %126 = arith.addf %123, %125 : vector<2x128xf32>
    %127 = arith.subf %46, %54 : vector<2x128xf32>
    %128 = math.absf %127 : vector<2x128xf32>
    %129 = arith.addf %126, %128 : vector<2x128xf32>
    %cst_46 = arith.constant 2.500000e-01 : f32
    %130 = vector.broadcast %cst_46 : f32 to vector<2x128xf32>
    %131 = arith.mulf %129, %130 : vector<2x128xf32>
    %132 = arith.mulf %131, %59 : vector<2x128xf32>
    %cst_47 = arith.constant dense<0.000000e+00> : vector<2xf32>
    %133 = vector.multi_reduction <add>, %132, %cst_47 [1] : vector<2x128xf32> to vector<2xf32>
    %134 = vector.shape_cast %133 : vector<2xf32> to vector<2x1xf32>
    %cst_48 = arith.constant dense<0.000000e+00> : vector<2xf32>
    %135 = vector.multi_reduction <add>, %59, %cst_48 [1] : vector<2x128xf32> to vector<2xf32>
    %136 = vector.shape_cast %135 : vector<2xf32> to vector<2x1xf32>
    %137 = vector.shape_cast %36 : vector<2x1xf32> to vector<2x1xf32>
    %138 = vector.broadcast %137 : vector<2x1xf32> to vector<2x128xf32>
    %c0_49 = arith.constant 0 : index
    %c0_50 = arith.constant 0 : index
    %c0_51 = arith.constant 0 : index
    %139 = vector.load %arg7[%c0_49, %c0_50, %c0_51] : memref<1x2x128xf32, #tpu.memory_space<vmem>>, vector<1x2x128xf32>
    %140 = vector.shape_cast %139 : vector<1x2x128xf32> to vector<2x128xf32>
    %141 = vector.shape_cast %138 : vector<2x128xf32> to vector<1x2x128xf32>
    tpu.vector_store %arg7[%c0_49, %c0_50, %c0_51], %141 {strides = array<i32>} : memref<1x2x128xf32, #tpu.memory_space<vmem>>, vector<1x2x128xf32>,
    %142 = vector.shape_cast %38 : vector<2x1xf32> to vector<2x1xf32>
    %143 = vector.broadcast %142 : vector<2x1xf32> to vector<2x128xf32>
    %c0_52 = arith.constant 0 : index
    %c0_53 = arith.constant 0 : index
    %c0_54 = arith.constant 0 : index
    %144 = vector.load %arg8[%c0_52, %c0_53, %c0_54] : memref<1x2x128xf32, #tpu.memory_space<vmem>>, vector<1x2x128xf32>
    %145 = vector.shape_cast %144 : vector<1x2x128xf32> to vector<2x128xf32>
    %146 = vector.shape_cast %143 : vector<2x128xf32> to vector<1x2x128xf32>
    tpu.vector_store %arg8[%c0_52, %c0_53, %c0_54], %146 {strides = array<i32>} : memref<1x2x128xf32, #tpu.memory_space<vmem>>, vector<1x2x128xf32>,
    %147 = vector.shape_cast %118 : vector<2x1xf32> to vector<2x1xf32>
    %148 = vector.broadcast %147 : vector<2x1xf32> to vector<2x128xf32>
    %c0_55 = arith.constant 0 : index
    %c0_56 = arith.constant 0 : index
    %c0_57 = arith.constant 0 : index
    %149 = vector.load %arg9[%c0_55, %c0_56, %c0_57] : memref<1x2x128xf32, #tpu.memory_space<vmem>>, vector<1x2x128xf32>
    %150 = vector.shape_cast %149 : vector<1x2x128xf32> to vector<2x128xf32>
    %151 = vector.shape_cast %148 : vector<2x128xf32> to vector<1x2x128xf32>
    tpu.vector_store %arg9[%c0_55, %c0_56, %c0_57], %151 {strides = array<i32>} : memref<1x2x128xf32, #tpu.memory_space<vmem>>, vector<1x2x128xf32>,
    %152 = vector.shape_cast %134 : vector<2x1xf32> to vector<2x1xf32>
    %153 = vector.broadcast %152 : vector<2x1xf32> to vector<2x128xf32>
    %c0_58 = arith.constant 0 : index
    %c0_59 = arith.constant 0 : index
    %c0_60 = arith.constant 0 : index
    %154 = vector.load %arg10[%c0_58, %c0_59, %c0_60] : memref<1x2x128xf32, #tpu.memory_space<vmem>>, vector<1x2x128xf32>
    %155 = vector.shape_cast %154 : vector<1x2x128xf32> to vector<2x128xf32>
    %156 = vector.shape_cast %153 : vector<2x128xf32> to vector<1x2x128xf32>
    tpu.vector_store %arg10[%c0_58, %c0_59, %c0_60], %156 {strides = array<i32>} : memref<1x2x128xf32, #tpu.memory_space<vmem>>, vector<1x2x128xf32>,
    %157 = vector.shape_cast %136 : vector<2x1xf32> to vector<2x1xf32>
    %158 = vector.broadcast %157 : vector<2x1xf32> to vector<2x128xf32>
    %c0_61 = arith.constant 0 : index
    %c0_62 = arith.constant 0 : index
    %c0_63 = arith.constant 0 : index
    %159 = vector.load %arg11[%c0_61, %c0_62, %c0_63] : memref<1x2x128xf32, #tpu.memory_space<vmem>>, vector<1x2x128xf32>
    %160 = vector.shape_cast %159 : vector<1x2x128xf32> to vector<2x128xf32>
    %161 = vector.shape_cast %158 : vector<2x128xf32> to vector<1x2x128xf32>
    tpu.vector_store %arg11[%c0_61, %c0_62, %c0_63], %161 {strides = array<i32>} : memref<1x2x128xf32, #tpu.memory_space<vmem>>, vector<1x2x128xf32>,
    return
  }
  func.func @transform_0(%arg0: i32) -> i32 {
    %c0_i32 = arith.constant 0 : i32
    %c0_i32_0 = arith.constant 0 : i32
    return %c0_i32 : i32
  }
  func.func @transform_1(%arg0: i32) -> i32 {
    %c0_i32 = arith.constant 0 : i32
    %c0_i32_0 = arith.constant 0 : i32
    return %c0_i32 : i32
  }
  func.func @transform_2(%arg0: i32) -> (i32, i32, i32) {
    %c0_i32 = arith.constant 0 : i32
    %c0_i32_0 = arith.constant 0 : i32
    %c0_i32_1 = arith.constant 0 : i32
    return %c0_i32, %arg0, %c0_i32_0 : i32, i32, i32
  }
  func.func @transform_3(%arg0: i32) -> (i32, i32) {
    %c0_i32 = arith.constant 0 : i32
    %c0_i32_0 = arith.constant 0 : i32
    return %c0_i32, %arg0 : i32, i32
  }
  func.func @transform_4(%arg0: i32) -> (i32, i32, i32) {
    %c0_i32 = arith.constant 0 : i32
    %c0_i32_0 = arith.constant 0 : i32
    %c0_i32_1 = arith.constant 0 : i32
    return %c0_i32, %c0_i32_0, %arg0 : i32, i32, i32
  }
  func.func @transform_5(%arg0: i32) -> (i32, i32, i32) {
    %c0_i32 = arith.constant 0 : i32
    %c0_i32_0 = arith.constant 0 : i32
    %c0_i32_1 = arith.constant 0 : i32
    return %c0_i32, %c0_i32_0, %arg0 : i32, i32, i32
  }
  func.func @transform_6(%arg0: i32) -> (i32, i32, i32) {
    %c0_i32 = arith.constant 0 : i32
    %c0_i32_0 = arith.constant 0 : i32
    %c0_i32_1 = arith.constant 0 : i32
    return %arg0, %c0_i32, %c0_i32_0 : i32, i32, i32
  }
  func.func @transform_7(%arg0: i32) -> (i32, i32, i32) {
    %c0_i32 = arith.constant 0 : i32
    %c0_i32_0 = arith.constant 0 : i32
    %c0_i32_1 = arith.constant 0 : i32
    return %arg0, %c0_i32, %c0_i32_0 : i32, i32, i32
  }
  func.func @transform_8(%arg0: i32) -> (i32, i32, i32) {
    %c0_i32 = arith.constant 0 : i32
    %c0_i32_0 = arith.constant 0 : i32
    %c0_i32_1 = arith.constant 0 : i32
    return %arg0, %c0_i32, %c0_i32_0 : i32, i32, i32
  }
  func.func @transform_9(%arg0: i32) -> (i32, i32, i32) {
    %c0_i32 = arith.constant 0 : i32
    %c0_i32_0 = arith.constant 0 : i32
    %c0_i32_1 = arith.constant 0 : i32
    return %arg0, %c0_i32, %c0_i32_0 : i32, i32, i32
  }
  func.func @transform_10(%arg0: i32) -> (i32, i32, i32) {
    %c0_i32 = arith.constant 0 : i32
    %c0_i32_0 = arith.constant 0 : i32
    %c0_i32_1 = arith.constant 0 : i32
    return %arg0, %c0_i32, %c0_i32_0 : i32, i32, i32
  }
}

</mosaic_0001>

<llo_original>
// kernel: tpu_custom_call.1
$region0: #{tpu_custom_call.1}
  #allocation0 [shape = 'u32[]', space=smem, size = 0x4, offset = 0x4, fixed_abs, tag = 'smem constant byte address 0x4 - core index']
  #allocation1 [shape = 'u32[144,128]{1,0:T(1,128)}', space=vmem, size = 0x12000, scoped, tag = 'internal scratch']
  #allocation2 [shape = 'f32[1]{0:T(128)S(6)}', space=smem, size = 0x200, scoped, tag = 'scoped memory for tpu_custom_call.1']
  #allocation3 [shape = 's32[1]{0:T(128)S(6)}', space=smem, size = 0x200, scoped, tag = 'scoped memory for tpu_custom_call.1']
  %s0 = inlined_call_operand.<no memory space> [shape: f32[1], index: 0, kind: input, shape index: {}]
  %s1 = inlined_call_operand.<no memory space> [shape: s32[1], index: 1, kind: input, shape index: {}]
  %s2 = inlined_call_operand.vmem [shape: f32[2,128,8], index: 2, kind: input, shape index: {}]
  %s3 = inlined_call_operand.vmem [shape: s32[2,128], index: 3, kind: input, shape index: {}]
  %s4 = inlined_call_operand.vmem [shape: f32[4,2,128], index: 4, kind: input, shape index: {}]
  %s5 = inlined_call_operand.vmem [shape: f32[4,2,128], index: 5, kind: input, shape index: {}]
  %s6 = inlined_call_operand.hbm [shape: f32[1,2,128], index: 6, kind: output, shape index: {0}]
  %s7 = inlined_call_operand.hbm [shape: f32[1,2,128], index: 7, kind: output, shape index: {1}]
  %s8 = inlined_call_operand.hbm [shape: f32[1,2,128], index: 8, kind: output, shape index: {2}]
  %s9 = inlined_call_operand.hbm [shape: f32[1,2,128], index: 9, kind: output, shape index: {3}]
  %s10 = inlined_call_operand.hbm [shape: f32[1,2,128], index: 10, kind: output, shape index: {4}]
  %11 = xla_tuple %s6, %s7, %s8, %s9, %s10
  %s12 = sld [smem:[#allocation0]]
  $region66: #{tpu_custom_call.1} parent=0
    _
  %s14 = ssub.s32 1, %s12
  %s15 = scalar_select 0, %s14, %s12
  %16 = sst [smem:[#allocation2]] %s0
  %17 = sst [smem:[#allocation3]] %s1
  $region1: #{tpu_custom_call.1} parent=0
    #allocation4 [shape = 'u8[1024]{0}', space=vmem, size = 0x400, scoped, tag = 'output window, operand 0, single buffered']
    #allocation5 [shape = 's32[1]{0}', space=sflag, size = 0x4, scoped, tag = 'scoped memory for tpu_custom_call.1']
    #allocation6 [shape = 'u8[1024]{0}', space=vmem, size = 0x400, scoped, tag = 'output window, operand 1, single buffered']
    #allocation7 [shape = 's32[1]{0}', space=sflag, size = 0x4, scoped, tag = 'scoped memory for tpu_custom_call.1']
    #allocation8 [shape = 'u8[1024]{0}', space=vmem, size = 0x400, scoped, tag = 'output window, operand 2, single buffered']
    #allocation9 [shape = 'u8[1024]{0}', space=vmem, size = 0x400, scoped, tag = 'output window, operand 3, single buffered']
    #allocation10 [shape = 's32[1]{0}', space=sflag, size = 0x4, scoped, tag = 'scoped memory for tpu_custom_call.1']
    #allocation11 [shape = 'u8[1024]{0}', space=vmem, size = 0x400, scoped, tag = 'output window, operand 4, single buffered']
    %18 = vsyncpa [#allocation5], 0
    %19 = vsyncpa [#allocation7], 0
    %20 = vsyncpa [#allocation10], 0
    // Predicated region
    $region2: #{tpu_custom_call.1} parent=1 // pred_check
      _
    $region3: #{tpu_custom_call.1} parent=1 // pred_check_branch
      %22 = sbr.rel (0) target = $region5
    $region4: #{tpu_custom_call.1} parent=1 // pred_region
      _
    $region5: #{tpu_custom_call.1} parent=1 // pred_fallthru
      _
    // Predicated region
    $region6: #{tpu_custom_call.1} parent=1 // pred_check
      _
    $region7: #{tpu_custom_call.1} parent=1 // pred_check_branch
      %24 = sbr.rel (0) target = $region9
    $region8: #{tpu_custom_call.1} parent=1 // pred_region
      _
    $region9: #{tpu_custom_call.1} parent=1 // pred_fallthru
      _
    // Predicated region
    $region10: #{tpu_custom_call.1} parent=1 // pred_check
      _
    $region11: #{tpu_custom_call.1} parent=1 // pred_check_branch
      %26 = sbr.rel (0) target = $region13
    $region12: #{tpu_custom_call.1} parent=1 // pred_region
      _
    $region13: #{tpu_custom_call.1} parent=1 // pred_fallthru
      _
    // Predicated region
    $region14: #{tpu_custom_call.1} parent=1 // pred_check
      _
    $region15: #{tpu_custom_call.1} parent=1 // pred_check_branch
      %28 = sbr.rel (0) target = $region17
    $region16: #{tpu_custom_call.1} parent=1 // pred_region
      _
    $region17: #{tpu_custom_call.1} parent=1 // pred_fallthru
      _
    // Predicated region
    $region18: #{tpu_custom_call.1} parent=1 // pred_check
      _
    $region19: #{tpu_custom_call.1} parent=1 // pred_check_branch
      %30 = sbr.rel (0) target = $region21
    $region20: #{tpu_custom_call.1} parent=1 // pred_region
      _
    $region21: #{tpu_custom_call.1} parent=1 // pred_fallthru
      _
    // Predicated region
    $region22: #{tpu_custom_call.1} parent=1 // pred_check
      _
    $region23: #{tpu_custom_call.1} parent=1 // pred_check_branch
      %32 = sbr.rel (0) target = $region25
    $region24: #{tpu_custom_call.1} parent=1 // pred_region
      _
    $region25: #{tpu_custom_call.1} parent=1 // pred_fallthru
      _
    %s33 = sld [smem:[#allocation2]]
    %s34 = sld [smem:[#allocation3]]
    %v35 = vlaneseq
    %v36 = vand.u32 %v35, 127
    %s37 = smul.u32 0, 128
    %v38 = vstv %s37
    %v39 = vadd.s32 %v36, %v38
    %v40 = vstv %s34
    %vm41 = vcmp.lt.s32.totalorder %v39, %v40
    %v42 = vsel %vm41, 1, 0
    %v43 = vcvt.s32.f32 %v42
    %v44 = vld [vmem:[%s3] sm:$0x3]
    %v45 = vld [vmem:[%s2] sm:$0xff]
    %v46 = vld [vmem:[%s2 + $0x8] sm:$0xff]
    %v47 = vld [vmem:[%s2 + $0x10] sm:$0xff]
    %v48 = vld [vmem:[%s2 + $0x18] sm:$0xff]
    %v49 = vld [vmem:[%s2 + $0x20] sm:$0xff]
    %v50 = vld [vmem:[%s2 + $0x28] sm:$0xff]
    %v51 = vld [vmem:[%s2 + $0x30] sm:$0xff]
    %v52 = vld [vmem:[%s2 + $0x38] sm:$0xff]
    %v53 = vld [vmem:[%s2 + $0x40] sm:$0xff]
    %v54 = vld [vmem:[%s2 + $0x48] sm:$0xff]
    %v55 = vld [vmem:[%s2 + $0x50] sm:$0xff]
    %v56 = vld [vmem:[%s2 + $0x58] sm:$0xff]
    %v57 = vld [vmem:[%s2 + $0x60] sm:$0xff]
    %v58 = vld [vmem:[%s2 + $0x68] sm:$0xff]
    %v59 = vld [vmem:[%s2 + $0x70] sm:$0xff]
    %v60 = vld [vmem:[%s2 + $0x78] sm:$0xff]
    %v61 = vld [vmem:[%s2 + $0x80] sm:$0xff]
    %v62 = vld [vmem:[%s2 + $0x88] sm:$0xff]
    %v63 = vld [vmem:[%s2 + $0x90] sm:$0xff]
    %v64 = vld [vmem:[%s2 + $0x98] sm:$0xff]
    %v65 = vld [vmem:[%s2 + $0xa0] sm:$0xff]
    %v66 = vld [vmem:[%s2 + $0xa8] sm:$0xff]
    %v67 = vld [vmem:[%s2 + $0xb0] sm:$0xff]
    %v68 = vld [vmem:[%s2 + $0xb8] sm:$0xff]
    %v69 = vld [vmem:[%s2 + $0xc0] sm:$0xff]
    %v70 = vld [vmem:[%s2 + $0xc8] sm:$0xff]
    %v71 = vld [vmem:[%s2 + $0xd0] sm:$0xff]
    %v72 = vld [vmem:[%s2 + $0xd8] sm:$0xff]
    %v73 = vld [vmem:[%s2 + $0xe0] sm:$0xff]
    %v74 = vld [vmem:[%s2 + $0xe8] sm:$0xff]
    %v75 = vld [vmem:[%s2 + $0xf0] sm:$0xff]
    %v76 = vld [vmem:[%s2 + $0xf8] sm:$0xff]
    %vm77 = vcmask 64512
    %v78 = vsel %vm77, %v45, -inf
    %79 = vmax.xlane.f32.xlu0 %v78
    %v80 = vpop.xlane.xlu0 %79
    %v81 = vsel %vm77, %v46, -inf
    %82 = vmax.xlane.f32.xlu0 %v81
    %v83 = vpop.xlane.xlu0 %82
    %v84 = vsel %vm77, %v47, -inf
    %85 = vmax.xlane.f32.xlu0 %v84
    %v86 = vpop.xlane.xlu0 %85
    %v87 = vsel %vm77, %v48, -inf
    %88 = vmax.xlane.f32.xlu0 %v87
    %v89 = vpop.xlane.xlu0 %88
    %v90 = vsel %vm77, %v49, -inf
    %91 = vmax.xlane.f32.xlu0 %v90
    %v92 = vpop.xlane.xlu0 %91
    %v93 = vsel %vm77, %v50, -inf
    %94 = vmax.xlane.f32.xlu0 %v93
    %v95 = vpop.xlane.xlu0 %94
    %v96 = vsel %vm77, %v51, -inf
    %97 = vmax.xlane.f32.xlu0 %v96
    %v98 = vpop.xlane.xlu0 %97
    %v99 = vsel %vm77, %v52, -inf
    %100 = vmax.xlane.f32.xlu0 %v99
    %v101 = vpop.xlane.xlu0 %100
    %v102 = vsel %vm77, %v53, -inf
    %103 = vmax.xlane.f32.xlu0 %v102
    %v104 = vpop.xlane.xlu0 %103
    %v105 = vsel %vm77, %v54, -inf
    %106 = vmax.xlane.f32.xlu0 %v105
    %v107 = vpop.xlane.xlu0 %106
    %v108 = vsel %vm77, %v55, -inf
    %109 = vmax.xlane.f32.xlu0 %v108
    %v110 = vpop.xlane.xlu0 %109
    %v111 = vsel %vm77, %v56, -inf
    %112 = vmax.xlane.f32.xlu0 %v111
    %v113 = vpop.xlane.xlu0 %112
    %v114 = vsel %vm77, %v57, -inf
    %115 = vmax.xlane.f32.xlu0 %v114
    %v116 = vpop.xlane.xlu0 %115
    %v117 = vsel %vm77, %v58, -inf
    %118 = vmax.xlane.f32.xlu0 %v117
    %v119 = vpop.xlane.xlu0 %118
    %v120 = vsel %vm77, %v59, -inf
    %121 = vmax.xlane.f32.xlu0 %v120
    %v122 = vpop.xlane.xlu0 %121
    %v123 = vsel %vm77, %v60, -inf
    %124 = vmax.xlane.f32.xlu0 %v123
    %v125 = vpop.xlane.xlu0 %124
    %v126 = vsel %vm77, %v61, -inf
    %127 = vmax.xlane.f32.xlu0 %v126
    %v128 = vpop.xlane.xlu0 %127
    %v129 = vsel %vm77, %v62, -inf
    %130 = vmax.xlane.f32.xlu0 %v129
    %v131 = vpop.xlane.xlu0 %130
    %v132 = vsel %vm77, %v63, -inf
    %133 = vmax.xlane.f32.xlu0 %v132
    %v134 = vpop.xlane.xlu0 %133
    %v135 = vsel %vm77, %v64, -inf
    %136 = vmax.xlane.f32.xlu0 %v135
    %v137 = vpop.xlane.xlu0 %136
    %v138 = vsel %vm77, %v65, -inf
    %139 = vmax.xlane.f32.xlu0 %v138
    %v140 = vpop.xlane.xlu0 %139
    %v141 = vsel %vm77, %v66, -inf
    %142 = vmax.xlane.f32.xlu0 %v141
    %v143 = vpop.xlane.xlu0 %142
    %v144 = vsel %vm77, %v67, -inf
    %145 = vmax.xlane.f32.xlu0 %v144
    %v146 = vpop.xlane.xlu0 %145
    %v147 = vsel %vm77, %v68, -inf
    %148 = vmax.xlane.f32.xlu0 %v147
    %v149 = vpop.xlane.xlu0 %148
    %v150 = vsel %vm77, %v69, -inf
    %151 = vmax.xlane.f32.xlu0 %v150
    %v152 = vpop.xlane.xlu0 %151
    %v153 = vsel %vm77, %v70, -inf
    %154 = vmax.xlane.f32.xlu0 %v153
    %v155 = vpop.xlane.xlu0 %154
    %v156 = vsel %vm77, %v71, -inf
    %157 = vmax.xlane.f32.xlu0 %v156
    %v158 = vpop.xlane.xlu0 %157
    %v159 = vsel %vm77, %v72, -inf
    %160 = vmax.xlane.f32.xlu0 %v159
    %v161 = vpop.xlane.xlu0 %160
    %v162 = vsel %vm77, %v73, -inf
    %163 = vmax.xlane.f32.xlu0 %v162
    %v164 = vpop.xlane.xlu0 %163
    %v165 = vsel %vm77, %v74, -inf
    %166 = vmax.xlane.f32.xlu0 %v165
    %v167 = vpop.xlane.xlu0 %166
    %v168 = vsel %vm77, %v75, -inf
    %169 = vmax.xlane.f32.xlu0 %v168
    %v170 = vpop.xlane.xlu0 %169
    %v171 = vsel %vm77, %v76, -inf
    %172 = vmax.xlane.f32.xlu0 %v171
    %v173 = vpop.xlane.xlu0 %172
    %v174 = vsub.f32 %v45, %v80
    %v175 = vsub.f32 %v46, %v83
    %v176 = vsub.f32 %v47, %v86
    %v177 = vsub.f32 %v48, %v89
    %v178 = vsub.f32 %v49, %v92
    %v179 = vsub.f32 %v50, %v95
    %v180 = vsub.f32 %v51, %v98
    %v181 = vsub.f32 %v52, %v101
    %v182 = vsub.f32 %v53, %v104
    %v183 = vsub.f32 %v54, %v107
    %v184 = vsub.f32 %v55, %v110
    %v185 = vsub.f32 %v56, %v113
    %v186 = vsub.f32 %v57, %v116
    %v187 = vsub.f32 %v58, %v119
    %v188 = vsub.f32 %v59, %v122
    %v189 = vsub.f32 %v60, %v125
    %v190 = vsub.f32 %v61, %v128
    %v191 = vsub.f32 %v62, %v131
    %v192 = vsub.f32 %v63, %v134
    %v193 = vsub.f32 %v64, %v137
    %v194 = vsub.f32 %v65, %v140
    %v195 = vsub.f32 %v66, %v143
    %v196 = vsub.f32 %v67, %v146
    %v197 = vsub.f32 %v68, %v149
    %v198 = vsub.f32 %v69, %v152
    %v199 = vsub.f32 %v70, %v155
    %v200 = vsub.f32 %v71, %v158
    %v201 = vsub.f32 %v72, %v161
    %v202 = vsub.f32 %v73, %v164
    %v203 = vsub.f32 %v74, %v167
    %v204 = vsub.f32 %v75, %v170
    %v205 = vsub.f32 %v76, %v173
    %v206 = vmul.f32 %v174, 1.442695
    %v207 = vpow.pop %v206
    %v208 = vmul.f32 %v175, 1.442695
    %v209 = vpow.pop %v208
    %v210 = vmul.f32 %v176, 1.442695
    %v211 = vpow.pop %v210
    %v212 = vmul.f32 %v177, 1.442695
    %v213 = vpow.pop %v212
    %v214 = vmul.f32 %v178, 1.442695
    %v215 = vpow.pop %v214
    %v216 = vmul.f32 %v179, 1.442695
    %v217 = vpow.pop %v216
    %v218 = vmul.f32 %v180, 1.442695
    %v219 = vpow.pop %v218
    %v220 = vmul.f32 %v181, 1.442695
    %v221 = vpow.pop %v220
    %v222 = vmul.f32 %v182, 1.442695
    %v223 = vpow.pop %v222
    %v224 = vmul.f32 %v183, 1.442695
    %v225 = vpow.pop %v224
    %v226 = vmul.f32 %v184, 1.442695
    %v227 = vpow.pop %v226
    %v228 = vmul.f32 %v185, 1.442695
    %v229 = vpow.pop %v228
    %v230 = vmul.f32 %v186, 1.442695
    %v231 = vpow.pop %v230
    %v232 = vmul.f32 %v187, 1.442695
    %v233 = vpow.pop %v232
    %v234 = vmul.f32 %v188, 1.442695
    %v235 = vpow.pop %v234
    %v236 = vmul.f32 %v189, 1.442695
    %v237 = vpow.pop %v236
    %v238 = vmul.f32 %v190, 1.442695
    %v239 = vpow.pop %v238
    %v240 = vmul.f32 %v191, 1.442695
    %v241 = vpow.pop %v240
    %v242 = vmul.f32 %v192, 1.442695
    %v243 = vpow.pop %v242
    %v244 = vmul.f32 %v193, 1.442695
    %v245 = vpow.pop %v244
    %v246 = vmul.f32 %v194, 1.442695
    %v247 = vpow.pop %v246
    %v248 = vmul.f32 %v195, 1.442695
    %v249 = vpow.pop %v248
    %v250 = vmul.f32 %v196, 1.442695
    %v251 = vpow.pop %v250
    %v252 = vmul.f32 %v197, 1.442695
    %v253 = vpow.pop %v252
    %v254 = vmul.f32 %v198, 1.442695
    %v255 = vpow.pop %v254
    %v256 = vmul.f32 %v199, 1.442695
    %v257 = vpow.pop %v256
    %v258 = vmul.f32 %v200, 1.442695
    %v259 = vpow.pop %v258
    %v260 = vmul.f32 %v201, 1.442695
    %v261 = vpow.pop %v260
    %v262 = vmul.f32 %v202, 1.442695
    %v263 = vpow.pop %v262
    %v264 = vmul.f32 %v203, 1.442695
    %v265 = vpow.pop %v264
    %v266 = vmul.f32 %v204, 1.442695
    %v267 = vpow.pop %v266
    %v268 = vmul.f32 %v205, 1.442695
    %v269 = vpow.pop %v268
    %v270 = vsel %vm77, %v207, 0.0
    %271 = vadd.xlane.f32.xlu0 %v270
    %v272 = vpop.xlane.xlu0 %271
    %v273 = vsel %vm77, %v209, 0.0
    %274 = vadd.xlane.f32.xlu0 %v273
    %v275 = vpop.xlane.xlu0 %274
    %v276 = vsel %vm77, %v211, 0.0
    %277 = vadd.xlane.f32.xlu0 %v276
    %v278 = vpop.xlane.xlu0 %277
    %v279 = vsel %vm77, %v213, 0.0
    %280 = vadd.xlane.f32.xlu0 %v279
    %v281 = vpop.xlane.xlu0 %280
    %v282 = vsel %vm77, %v215, 0.0
    %283 = vadd.xlane.f32.xlu0 %v282
    %v284 = vpop.xlane.xlu0 %283
    %v285 = vsel %vm77, %v217, 0.0
    %286 = vadd.xlane.f32.xlu0 %v285
    %v287 = vpop.xlane.xlu0 %286
    %v288 = vsel %vm77, %v219, 0.0
    %289 = vadd.xlane.f32.xlu0 %v288
    %v290 = vpop.xlane.xlu0 %289
    %v291 = vsel %vm77, %v221, 0.0
    %292 = vadd.xlane.f32.xlu0 %v291
    %v293 = vpop.xlane.xlu0 %292
    %v294 = vsel %vm77, %v223, 0.0
    %295 = vadd.xlane.f32.xlu0 %v294
    %v296 = vpop.xlane.xlu0 %295
    %v297 = vsel %vm77, %v225, 0.0
    %298 = vadd.xlane.f32.xlu0 %v297
    %v299 = vpop.xlane.xlu0 %298
    %v300 = vsel %vm77, %v227, 0.0
    %301 = vadd.xlane.f32.xlu0 %v300
    %v302 = vpop.xlane.xlu0 %301
    %v303 = vsel %vm77, %v229, 0.0
    %304 = vadd.xlane.f32.xlu0 %v303
    %v305 = vpop.xlane.xlu0 %304
    %v306 = vsel %vm77, %v231, 0.0
    %307 = vadd.xlane.f32.xlu0 %v306
    %v308 = vpop.xlane.xlu0 %307
    %v309 = vsel %vm77, %v233, 0.0
    %310 = vadd.xlane.f32.xlu0 %v309
    %v311 = vpop.xlane.xlu0 %310
    %v312 = vsel %vm77, %v235, 0.0
    %313 = vadd.xlane.f32.xlu0 %v312
    %v314 = vpop.xlane.xlu0 %313
    %v315 = vsel %vm77, %v237, 0.0
    %316 = vadd.xlane.f32.xlu0 %v315
    %v317 = vpop.xlane.xlu0 %316
    %v318 = vsel %vm77, %v239, 0.0
    %319 = vadd.xlane.f32.xlu0 %v318
    %v320 = vpop.xlane.xlu0 %319
    %v321 = vsel %vm77, %v241, 0.0
    %322 = vadd.xlane.f32.xlu0 %v321
    %v323 = vpop.xlane.xlu0 %322
    %v324 = vsel %vm77, %v243, 0.0
    %325 = vadd.xlane.f32.xlu0 %v324
    %v326 = vpop.xlane.xlu0 %325
    %v327 = vsel %vm77, %v245, 0.0
    %328 = vadd.xlane.f32.xlu0 %v327
    %v329 = vpop.xlane.xlu0 %328
    %v330 = vsel %vm77, %v247, 0.0
    %331 = vadd.xlane.f32.xlu0 %v330
    %v332 = vpop.xlane.xlu0 %331
    %v333 = vsel %vm77, %v249, 0.0
    %334 = vadd.xlane.f32.xlu0 %v333
    %v335 = vpop.xlane.xlu0 %334
    %v336 = vsel %vm77, %v251, 0.0
    %337 = vadd.xlane.f32.xlu0 %v336
    %v338 = vpop.xlane.xlu0 %337
    %v339 = vsel %vm77, %v253, 0.0
    %340 = vadd.xlane.f32.xlu0 %v339
    %v341 = vpop.xlane.xlu0 %340
    %v342 = vsel %vm77, %v255, 0.0
    %343 = vadd.xlane.f32.xlu0 %v342
    %v344 = vpop.xlane.xlu0 %343
    %v345 = vsel %vm77, %v257, 0.0
    %346 = vadd.xlane.f32.xlu0 %v345
    %v347 = vpop.xlane.xlu0 %346
    %v348 = vsel %vm77, %v259, 0.0
    %349 = vadd.xlane.f32.xlu0 %v348
    %v350 = vpop.xlane.xlu0 %349
    %v351 = vsel %vm77, %v261, 0.0
    %352 = vadd.xlane.f32.xlu0 %v351
    %v353 = vpop.xlane.xlu0 %352
    %v354 = vsel %vm77, %v263, 0.0
    %355 = vadd.xlane.f32.xlu0 %v354
    %v356 = vpop.xlane.xlu0 %355
    %v357 = vsel %vm77, %v265, 0.0
    %358 = vadd.xlane.f32.xlu0 %v357
    %v359 = vpop.xlane.xlu0 %358
    %v360 = vsel %vm77, %v267, 0.0
    %361 = vadd.xlane.f32.xlu0 %v360
    %v362 = vpop.xlane.xlu0 %361
    %v363 = vsel %vm77, %v269, 0.0
    %364 = vadd.xlane.f32.xlu0 %v363
    %v365 = vpop.xlane.xlu0 %364
    %v366 = vlog2.pop %v272
    %v367 = vmul.f32 %v366, 0.6931472
    %v368 = vlog2.pop %v275
    %v369 = vmul.f32 %v368, 0.6931472
    %v370 = vlog2.pop %v278
    %v371 = vmul.f32 %v370, 0.6931472
    %v372 = vlog2.pop %v281
    %v373 = vmul.f32 %v372, 0.6931472
    %v374 = vlog2.pop %v284
    %v375 = vmul.f32 %v374, 0.6931472
    %v376 = vlog2.pop %v287
    %v377 = vmul.f32 %v376, 0.6931472
    %v378 = vlog2.pop %v290
    %v379 = vmul.f32 %v378, 0.6931472
    %v380 = vlog2.pop %v293
    %v381 = vmul.f32 %v380, 0.6931472
    %v382 = vlog2.pop %v296
    %v383 = vmul.f32 %v382, 0.6931472
    %v384 = vlog2.pop %v299
    %v385 = vmul.f32 %v384, 0.6931472
    %v386 = vlog2.pop %v302
    %v387 = vmul.f32 %v386, 0.6931472
    %v388 = vlog2.pop %v305
    %v389 = vmul.f32 %v388, 0.6931472
    %v390 = vlog2.pop %v308
    %v391 = vmul.f32 %v390, 0.6931472
    %v392 = vlog2.pop %v311
    %v393 = vmul.f32 %v392, 0.6931472
    %v394 = vlog2.pop %v314
    %v395 = vmul.f32 %v394, 0.6931472
    %v396 = vlog2.pop %v317
    %v397 = vmul.f32 %v396, 0.6931472
    %v398 = vlog2.pop %v320
    %v399 = vmul.f32 %v398, 0.6931472
    %v400 = vlog2.pop %v323
    %v401 = vmul.f32 %v400, 0.6931472
    %v402 = vlog2.pop %v326
    %v403 = vmul.f32 %v402, 0.6931472
    %v404 = vlog2.pop %v329
    %v405 = vmul.f32 %v404, 0.6931472
    %v406 = vlog2.pop %v332
    %v407 = vmul.f32 %v406, 0.6931472
    %v408 = vlog2.pop %v335
    %v409 = vmul.f32 %v408, 0.6931472
    %v410 = vlog2.pop %v338
    %v411 = vmul.f32 %v410, 0.6931472
    %v412 = vlog2.pop %v341
    %v413 = vmul.f32 %v412, 0.6931472
    %v414 = vlog2.pop %v344
    %v415 = vmul.f32 %v414, 0.6931472
    %v416 = vlog2.pop %v347
    %v417 = vmul.f32 %v416, 0.6931472
    %v418 = vlog2.pop %v350
    %v419 = vmul.f32 %v418, 0.6931472
    %v420 = vlog2.pop %v353
    %v421 = vmul.f32 %v420, 0.6931472
    %v422 = vlog2.pop %v356
    %v423 = vmul.f32 %v422, 0.6931472
    %v424 = vlog2.pop %v359
    %v425 = vmul.f32 %v424, 0.6931472
    %v426 = vlog2.pop %v362
    %v427 = vmul.f32 %v426, 0.6931472
    %v428 = vlog2.pop %v365
    %v429 = vmul.f32 %v428, 0.6931472
    %v430 = vadd.f32 %v80, %v367
    %v431 = vadd.f32 %v83, %v369
    %v432 = vadd.f32 %v86, %v371
    %v433 = vadd.f32 %v89, %v373
    %v434 = vadd.f32 %v92, %v375
    %v435 = vadd.f32 %v95, %v377
    %v436 = vadd.f32 %v98, %v379
    %v437 = vadd.f32 %v101, %v381
    %v438 = vadd.f32 %v104, %v383
    %v439 = vadd.f32 %v107, %v385
    %v440 = vadd.f32 %v110, %v387
    %v441 = vadd.f32 %v113, %v389
    %v442 = vadd.f32 %v116, %v391
    %v443 = vadd.f32 %v119, %v393
    %v444 = vadd.f32 %v122, %v395
    %v445 = vadd.f32 %v125, %v397
    %v446 = vadd.f32 %v128, %v399
    %v447 = vadd.f32 %v131, %v401
    %v448 = vadd.f32 %v134, %v403
    %v449 = vadd.f32 %v137, %v405
    %v450 = vadd.f32 %v140, %v407
    %v451 = vadd.f32 %v143, %v409
    %v452 = vadd.f32 %v146, %v411
    %v453 = vadd.f32 %v149, %v413
    %v454 = vadd.f32 %v152, %v415
    %v455 = vadd.f32 %v155, %v417
    %v456 = vadd.f32 %v158, %v419
    %v457 = vadd.f32 %v161, %v421
    %v458 = vadd.f32 %v164, %v423
    %v459 = vadd.f32 %v167, %v425
    %v460 = vadd.f32 %v170, %v427
    %v461 = vadd.f32 %v173, %v429
    %v462 = vlaneseq
    %v463 = vshrl.u32 %v462, 7
    %v464 = vsub.s32 0, %v463
    %v465 = vrot.slane %v44, %v464
    %467 = vbcast.lane.b32.xlu0 %v465, 256
    %v468 = vpop.permute.xlu0 %467
    %s470 = sor.u32 256, 8
    %471 = vbcast.lane.b32.xlu0 %v465, %s470
    %v472 = vpop.permute.xlu0 %471
    %s474 = sor.u32 256, 16
    %475 = vbcast.lane.b32.xlu0 %v465, %s474
    %v476 = vpop.permute.xlu0 %475
    %s478 = sor.u32 256, 24
    %479 = vbcast.lane.b32.xlu0 %v465, %s478
    %v480 = vpop.permute.xlu0 %479
    %s482 = sor.u32 256, 32
    %483 = vbcast.lane.b32.xlu0 %v465, %s482
    %v484 = vpop.permute.xlu0 %483
    %s486 = sor.u32 256, 40
    %487 = vbcast.lane.b32.xlu0 %v465, %s486
    %v488 = vpop.permute.xlu0 %487
    %s490 = sor.u32 256, 48
    %491 = vbcast.lane.b32.xlu0 %v465, %s490
    %v492 = vpop.permute.xlu0 %491
    %s494 = sor.u32 256, 56
    %495 = vbcast.lane.b32.xlu0 %v465, %s494
    %v496 = vpop.permute.xlu0 %495
    %s498 = sor.u32 256, 64
    %499 = vbcast.lane.b32.xlu0 %v465, %s498
    %v500 = vpop.permute.xlu0 %499
    %s502 = sor.u32 256, 72
    %503 = vbcast.lane.b32.xlu0 %v465, %s502
    %v504 = vpop.permute.xlu0 %503
    %s506 = sor.u32 256, 80
    %507 = vbcast.lane.b32.xlu0 %v465, %s506
    %v508 = vpop.permute.xlu0 %507
    %s510 = sor.u32 256, 88
    %511 = vbcast.lane.b32.xlu0 %v465, %s510
    %v512 = vpop.permute.xlu0 %511
    %s514 = sor.u32 256, 96
    %515 = vbcast.lane.b32.xlu0 %v465, %s514
    %v516 = vpop.permute.xlu0 %515
    %s518 = sor.u32 256, 104
    %519 = vbcast.lane.b32.xlu0 %v465, %s518
    %v520 = vpop.permute.xlu0 %519
    %s522 = sor.u32 256, 112
    %523 = vbcast.lane.b32.xlu0 %v465, %s522
    %v524 = vpop.permute.xlu0 %523
    %s526 = sor.u32 256, 120
    %527 = vbcast.lane.b32.xlu0 %v465, %s526
    %v528 = vpop.permute.xlu0 %527
    %v529 = vlaneseq
    %v530 = vshrl.u32 %v529, 7
    %v531 = vsub.s32 1, %v530
    %v532 = vrot.slane %v44, %v531
    %534 = vbcast.lane.b32.xlu0 %v532, 256
    %v535 = vpop.permute.xlu0 %534
    %s537 = sor.u32 256, 8
    %538 = vbcast.lane.b32.xlu0 %v532, %s537
    %v539 = vpop.permute.xlu0 %538
    %s541 = sor.u32 256, 16
    %542 = vbcast.lane.b32.xlu0 %v532, %s541
    %v543 = vpop.permute.xlu0 %542
    %s545 = sor.u32 256, 24
    %546 = vbcast.lane.b32.xlu0 %v532, %s545
    %v547 = vpop.permute.xlu0 %546
    %s549 = sor.u32 256, 32
    %550 = vbcast.lane.b32.xlu0 %v532, %s549
    %v551 = vpop.permute.xlu0 %550
    %s553 = sor.u32 256, 40
    %554 = vbcast.lane.b32.xlu0 %v532, %s553
    %v555 = vpop.permute.xlu0 %554
    %s557 = sor.u32 256, 48
    %558 = vbcast.lane.b32.xlu0 %v532, %s557
    %v559 = vpop.permute.xlu0 %558
    %s561 = sor.u32 256, 56
    %562 = vbcast.lane.b32.xlu0 %v532, %s561
    %v563 = vpop.permute.xlu0 %562
    %s565 = sor.u32 256, 64
    %566 = vbcast.lane.b32.xlu0 %v532, %s565
    %v567 = vpop.permute.xlu0 %566
    %s569 = sor.u32 256, 72
    %570 = vbcast.lane.b32.xlu0 %v532, %s569
    %v571 = vpop.permute.xlu0 %570
    %s573 = sor.u32 256, 80
    %574 = vbcast.lane.b32.xlu0 %v532, %s573
    %v575 = vpop.permute.xlu0 %574
    %s577 = sor.u32 256, 88
    %578 = vbcast.lane.b32.xlu0 %v532, %s577
    %v579 = vpop.permute.xlu0 %578
    %s581 = sor.u32 256, 96
    %582 = vbcast.lane.b32.xlu0 %v532, %s581
    %v583 = vpop.permute.xlu0 %582
    %s585 = sor.u32 256, 104
    %586 = vbcast.lane.b32.xlu0 %v532, %s585
    %v587 = vpop.permute.xlu0 %586
    %s589 = sor.u32 256, 112
    %590 = vbcast.lane.b32.xlu0 %v532, %s589
    %v591 = vpop.permute.xlu0 %590
    %s593 = sor.u32 256, 120
    %594 = vbcast.lane.b32.xlu0 %v532, %s593
    %v595 = vpop.permute.xlu0 %594
    %vm596 = vcmp.eq.s32.totalorder %v36, %v468
    %vm597 = vcmp.eq.s32.totalorder %v36, %v472
    %vm598 = vcmp.eq.s32.totalorder %v36, %v476
    %vm599 = vcmp.eq.s32.totalorder %v36, %v480
    %vm600 = vcmp.eq.s32.totalorder %v36, %v484
    %vm601 = vcmp.eq.s32.totalorder %v36, %v488
    %vm602 = vcmp.eq.s32.totalorder %v36, %v492
    %vm603 = vcmp.eq.s32.totalorder %v36, %v496
    %vm604 = vcmp.eq.s32.totalorder %v36, %v500
    %vm605 = vcmp.eq.s32.totalorder %v36, %v504
    %vm606 = vcmp.eq.s32.totalorder %v36, %v508
    %vm607 = vcmp.eq.s32.totalorder %v36, %v512
    %vm608 = vcmp.eq.s32.totalorder %v36, %v516
    %vm609 = vcmp.eq.s32.totalorder %v36, %v520
    %vm610 = vcmp.eq.s32.totalorder %v36, %v524
    %vm611 = vcmp.eq.s32.totalorder %v36, %v528
    %vm612 = vcmp.eq.s32.totalorder %v36, %v535
    %vm613 = vcmp.eq.s32.totalorder %v36, %v539
    %vm614 = vcmp.eq.s32.totalorder %v36, %v543
    %vm615 = vcmp.eq.s32.totalorder %v36, %v547
    %vm616 = vcmp.eq.s32.totalorder %v36, %v551
    %vm617 = vcmp.eq.s32.totalorder %v36, %v555
    %vm618 = vcmp.eq.s32.totalorder %v36, %v559
    %vm619 = vcmp.eq.s32.totalorder %v36, %v563
    %vm620 = vcmp.eq.s32.totalorder %v36, %v567
    %vm621 = vcmp.eq.s32.totalorder %v36, %v571
    %vm622 = vcmp.eq.s32.totalorder %v36, %v575
    %vm623 = vcmp.eq.s32.totalorder %v36, %v579
    %vm624 = vcmp.eq.s32.totalorder %v36, %v583
    %vm625 = vcmp.eq.s32.totalorder %v36, %v587
    %vm626 = vcmp.eq.s32.totalorder %v36, %v591
    %vm627 = vcmp.eq.s32.totalorder %v36, %v595
    %v628 = vsel %vm596, %v45, 0.0
    %v629 = vsel %vm597, %v46, 0.0
    %v630 = vsel %vm598, %v47, 0.0
    %v631 = vsel %vm599, %v48, 0.0
    %v632 = vsel %vm600, %v49, 0.0
    %v633 = vsel %vm601, %v50, 0.0
    %v634 = vsel %vm602, %v51, 0.0
    %v635 = vsel %vm603, %v52, 0.0
    %v636 = vsel %vm604, %v53, 0.0
    %v637 = vsel %vm605, %v54, 0.0
    %v638 = vsel %vm606, %v55, 0.0
    %v639 = vsel %vm607, %v56, 0.0
    %v640 = vsel %vm608, %v57, 0.0
    %v641 = vsel %vm609, %v58, 0.0
    %v642 = vsel %vm610, %v59, 0.0
    %v643 = vsel %vm611, %v60, 0.0
    %v644 = vsel %vm612, %v61, 0.0
    %v645 = vsel %vm613, %v62, 0.0
    %v646 = vsel %vm614, %v63, 0.0
    %v647 = vsel %vm615, %v64, 0.0
    %v648 = vsel %vm616, %v65, 0.0
    %v649 = vsel %vm617, %v66, 0.0
    %v650 = vsel %vm618, %v67, 0.0
    %v651 = vsel %vm619, %v68, 0.0
    %v652 = vsel %vm620, %v69, 0.0
    %v653 = vsel %vm621, %v70, 0.0
    %v654 = vsel %vm622, %v71, 0.0
    %v655 = vsel %vm623, %v72, 0.0
    %v656 = vsel %vm624, %v73, 0.0
    %v657 = vsel %vm625, %v74, 0.0
    %v658 = vsel %vm626, %v75, 0.0
    %v659 = vsel %vm627, %v76, 0.0
    %v660 = vsel %vm77, %v628, 0.0
    %661 = vadd.xlane.f32.xlu0 %v660
    %v662 = vpop.xlane.xlu0 %661
    %v663 = vsel %vm77, %v629, 0.0
    %664 = vadd.xlane.f32.xlu0 %v663
    %v665 = vpop.xlane.xlu0 %664
    %v666 = vsel %vm77, %v630, 0.0
    %667 = vadd.xlane.f32.xlu0 %v666
    %v668 = vpop.xlane.xlu0 %667
    %v669 = vsel %vm77, %v631, 0.0
    %670 = vadd.xlane.f32.xlu0 %v669
    %v671 = vpop.xlane.xlu0 %670
    %v672 = vsel %vm77, %v632, 0.0
    %673 = vadd.xlane.f32.xlu0 %v672
    %v674 = vpop.xlane.xlu0 %673
    %v675 = vsel %vm77, %v633, 0.0
    %676 = vadd.xlane.f32.xlu0 %v675
    %v677 = vpop.xlane.xlu0 %676
    %v678 = vsel %vm77, %v634, 0.0
    %679 = vadd.xlane.f32.xlu0 %v678
    %v680 = vpop.xlane.xlu0 %679
    %v681 = vsel %vm77, %v635, 0.0
    %682 = vadd.xlane.f32.xlu0 %v681
    %v683 = vpop.xlane.xlu0 %682
    %v684 = vsel %vm77, %v636, 0.0
    %685 = vadd.xlane.f32.xlu0 %v684
    %v686 = vpop.xlane.xlu0 %685
    %v687 = vsel %vm77, %v637, 0.0
    %688 = vadd.xlane.f32.xlu0 %v687
    %v689 = vpop.xlane.xlu0 %688
    %v690 = vsel %vm77, %v638, 0.0
    %691 = vadd.xlane.f32.xlu0 %v690
    %v692 = vpop.xlane.xlu0 %691
    %v693 = vsel %vm77, %v639, 0.0
    %694 = vadd.xlane.f32.xlu0 %v693
    %v695 = vpop.xlane.xlu0 %694
    %v696 = vsel %vm77, %v640, 0.0
    %697 = vadd.xlane.f32.xlu0 %v696
    %v698 = vpop.xlane.xlu0 %697
    %v699 = vsel %vm77, %v641, 0.0
    %700 = vadd.xlane.f32.xlu0 %v699
    %v701 = vpop.xlane.xlu0 %700
    %v702 = vsel %vm77, %v642, 0.0
    %703 = vadd.xlane.f32.xlu0 %v702
    %v704 = vpop.xlane.xlu0 %703
    %v705 = vsel %vm77, %v643, 0.0
    %706 = vadd.xlane.f32.xlu0 %v705
    %v707 = vpop.xlane.xlu0 %706
    %v708 = vsel %vm77, %v644, 0.0
    %709 = vadd.xlane.f32.xlu0 %v708
    %v710 = vpop.xlane.xlu0 %709
    %v711 = vsel %vm77, %v645, 0.0
    %712 = vadd.xlane.f32.xlu0 %v711
    %v713 = vpop.xlane.xlu0 %712
    %v714 = vsel %vm77, %v646, 0.0
    %715 = vadd.xlane.f32.xlu0 %v714
    %v716 = vpop.xlane.xlu0 %715
    %v717 = vsel %vm77, %v647, 0.0
    %718 = vadd.xlane.f32.xlu0 %v717
    %v719 = vpop.xlane.xlu0 %718
    %v720 = vsel %vm77, %v648, 0.0
    %721 = vadd.xlane.f32.xlu0 %v720
    %v722 = vpop.xlane.xlu0 %721
    %v723 = vsel %vm77, %v649, 0.0
    %724 = vadd.xlane.f32.xlu0 %v723
    %v725 = vpop.xlane.xlu0 %724
    %v726 = vsel %vm77, %v650, 0.0
    %727 = vadd.xlane.f32.xlu0 %v726
    %v728 = vpop.xlane.xlu0 %727
    %v729 = vsel %vm77, %v651, 0.0
    %730 = vadd.xlane.f32.xlu0 %v729
    %v731 = vpop.xlane.xlu0 %730
    %v732 = vsel %vm77, %v652, 0.0
    %733 = vadd.xlane.f32.xlu0 %v732
    %v734 = vpop.xlane.xlu0 %733
    %v735 = vsel %vm77, %v653, 0.0
    %736 = vadd.xlane.f32.xlu0 %v735
    %v737 = vpop.xlane.xlu0 %736
    %v738 = vsel %vm77, %v654, 0.0
    %739 = vadd.xlane.f32.xlu0 %v738
    %v740 = vpop.xlane.xlu0 %739
    %v741 = vsel %vm77, %v655, 0.0
    %742 = vadd.xlane.f32.xlu0 %v741
    %v743 = vpop.xlane.xlu0 %742
    %v744 = vsel %vm77, %v656, 0.0
    %745 = vadd.xlane.f32.xlu0 %v744
    %v746 = vpop.xlane.xlu0 %745
    %v747 = vsel %vm77, %v657, 0.0
    %748 = vadd.xlane.f32.xlu0 %v747
    %v749 = vpop.xlane.xlu0 %748
    %v750 = vsel %vm77, %v658, 0.0
    %751 = vadd.xlane.f32.xlu0 %v750
    %v752 = vpop.xlane.xlu0 %751
    %v753 = vsel %vm77, %v659, 0.0
    %754 = vadd.xlane.f32.xlu0 %v753
    %v755 = vpop.xlane.xlu0 %754
    %v756 = vsub.f32 %v430, %v662
    %v757 = vsub.f32 %v431, %v665
    %v758 = vsub.f32 %v432, %v668
    %v759 = vsub.f32 %v433, %v671
    %v760 = vsub.f32 %v434, %v674
    %v761 = vsub.f32 %v435, %v677
    %v762 = vsub.f32 %v436, %v680
    %v763 = vsub.f32 %v437, %v683
    %v764 = vsub.f32 %v438, %v686
    %v765 = vsub.f32 %v439, %v689
    %v766 = vsub.f32 %v440, %v692
    %v767 = vsub.f32 %v441, %v695
    %v768 = vsub.f32 %v442, %v698
    %v769 = vsub.f32 %v443, %v701
    %v770 = vsub.f32 %v444, %v704
    %v771 = vsub.f32 %v445, %v707
    %v772 = vsub.f32 %v446, %v710
    %v773 = vsub.f32 %v447, %v713
    %v774 = vsub.f32 %v448, %v716
    %v775 = vsub.f32 %v449, %v719
    %v776 = vsub.f32 %v450, %v722
    %v777 = vsub.f32 %v451, %v725
    %v778 = vsub.f32 %v452, %v728
    %v779 = vsub.f32 %v453, %v731
    %v780 = vsub.f32 %v454, %v734
    %v781 = vsub.f32 %v455, %v737
    %v782 = vsub.f32 %v456, %v740
    %v783 = vsub.f32 %v457, %v743
    %v784 = vsub.f32 %v458, %v746
    %v785 = vsub.f32 %v459, %v749
    %v786 = vsub.f32 %v460, %v752
    %v787 = vsub.f32 %v461, %v755
    %vm788 = vcmp.eq.s32.totalorder %v44, 0
    %v789 = vstv %s33
    %v790 = vsel %vm788, %v789, 1.0
    %v791 = vmul.f32 %v790, %v43
    %v824 = vlaneseq
    %v825 = vshrl.u32 %v824, 7
    %v826 = vsub.s32 %v36, %v825
    %v827 = vrot.slane %v756, %v826
    %v828 = vadd.s32 %v36, 4294967288
    %v829 = vlaneseq
    %v830 = vshrl.u32 %v829, 7
    %v831 = vsub.s32 %v828, %v830
    %v832 = vrot.slane %v757, %v831
    %vm833 = vcmask 130112
    %v834 = vsel %vm833, %v832, %v827
    %v835 = vadd.s32 %v36, 4294967280
    %v836 = vlaneseq
    %v837 = vshrl.u32 %v836, 7
    %v838 = vsub.s32 %v835, %v837
    %v839 = vrot.slane %v758, %v838
    %vm840 = vcmask 195712
    %v841 = vsel %vm840, %v839, %v834
    %v842 = vadd.s32 %v36, 4294967272
    %v843 = vlaneseq
    %v844 = vshrl.u32 %v843, 7
    %v845 = vsub.s32 %v842, %v844
    %v846 = vrot.slane %v759, %v845
    %vm847 = vcmask 261312
    %v848 = vsel %vm847, %v846, %v841
    %v849 = vadd.s32 %v36, 4294967264
    %v850 = vlaneseq
    %v851 = vshrl.u32 %v850, 7
    %v852 = vsub.s32 %v849, %v851
    %v853 = vrot.slane %v760, %v852
    %vm854 = vcmask 326912
    %v855 = vsel %vm854, %v853, %v848
    %v856 = vadd.s32 %v36, 4294967256
    %v857 = vlaneseq
    %v858 = vshrl.u32 %v857, 7
    %v859 = vsub.s32 %v856, %v858
    %v860 = vrot.slane %v761, %v859
    %vm861 = vcmask 392512
    %v862 = vsel %vm861, %v860, %v855
    %v863 = vadd.s32 %v36, 4294967248
    %v864 = vlaneseq
    %v865 = vshrl.u32 %v864, 7
    %v866 = vsub.s32 %v863, %v865
    %v867 = vrot.slane %v762, %v866
    %vm868 = vcmask 458112
    %v869 = vsel %vm868, %v867, %v862
    %v870 = vadd.s32 %v36, 4294967240
    %v871 = vlaneseq
    %v872 = vshrl.u32 %v871, 7
    %v873 = vsub.s32 %v870, %v872
    %v874 = vrot.slane %v763, %v873
    %vm875 = vcmask 523712
    %v876 = vsel %vm875, %v874, %v869
    %v877 = vadd.s32 %v36, 4294967232
    %v878 = vlaneseq
    %v879 = vshrl.u32 %v878, 7
    %v880 = vsub.s32 %v877, %v879
    %v881 = vrot.slane %v764, %v880
    %vm882 = vcmask 589312
    %v883 = vsel %vm882, %v881, %v876
    %v884 = vadd.s32 %v36, 4294967224
    %v885 = vlaneseq
    %v886 = vshrl.u32 %v885, 7
    %v887 = vsub.s32 %v884, %v886
    %v888 = vrot.slane %v765, %v887
    %vm889 = vcmask 654912
    %v890 = vsel %vm889, %v888, %v883
    %v891 = vadd.s32 %v36, 4294967216
    %v892 = vlaneseq
    %v893 = vshrl.u32 %v892, 7
    %v894 = vsub.s32 %v891, %v893
    %v895 = vrot.slane %v766, %v894
    %vm896 = vcmask 720512
    %v897 = vsel %vm896, %v895, %v890
    %v898 = vadd.s32 %v36, 4294967208
    %v899 = vlaneseq
    %v900 = vshrl.u32 %v899, 7
    %v901 = vsub.s32 %v898, %v900
    %v902 = vrot.slane %v767, %v901
    %vm903 = vcmask 786112
    %v904 = vsel %vm903, %v902, %v897
    %v905 = vadd.s32 %v36, 4294967200
    %v906 = vlaneseq
    %v907 = vshrl.u32 %v906, 7
    %v908 = vsub.s32 %v905, %v907
    %v909 = vrot.slane %v768, %v908
    %vm910 = vcmask 851712
    %v911 = vsel %vm910, %v909, %v904
    %v912 = vadd.s32 %v36, 4294967192
    %v913 = vlaneseq
    %v914 = vshrl.u32 %v913, 7
    %v915 = vsub.s32 %v912, %v914
    %v916 = vrot.slane %v769, %v915
    %vm917 = vcmask 917312
    %v918 = vsel %vm917, %v916, %v911
    %v919 = vadd.s32 %v36, 4294967184
    %v920 = vlaneseq
    %v921 = vshrl.u32 %v920, 7
    %v922 = vsub.s32 %v919, %v921
    %v923 = vrot.slane %v770, %v922
    %vm924 = vcmask 982912
    %v925 = vsel %vm924, %v923, %v918
    %v926 = vadd.s32 %v36, 4294967176
    %v927 = vlaneseq
    %v928 = vshrl.u32 %v927, 7
    %v929 = vsub.s32 %v926, %v928
    %v930 = vrot.slane %v771, %v929
    %vm931 = vcmask 1048512
    %v932 = vsel %vm931, %v930, %v925
    %v933 = vlaneseq
    %v934 = vshrl.u32 %v933, 7
    %v935 = vsub.s32 %v36, %v934
    %v936 = vrot.slane %v772, %v935
    %v937 = vlaneseq
    %v938 = vshrl.u32 %v937, 7
    %v939 = vsub.s32 %v828, %v938
    %v940 = vrot.slane %v773, %v939
    %v941 = vsel %vm833, %v940, %v936
    %v942 = vlaneseq
    %v943 = vshrl.u32 %v942, 7
    %v944 = vsub.s32 %v835, %v943
    %v945 = vrot.slane %v774, %v944
    %v946 = vsel %vm840, %v945, %v941
    %v947 = vlaneseq
    %v948 = vshrl.u32 %v947, 7
    %v949 = vsub.s32 %v842, %v948
    %v950 = vrot.slane %v775, %v949
    %v951 = vsel %vm847, %v950, %v946
    %v952 = vlaneseq
    %v953 = vshrl.u32 %v952, 7
    %v954 = vsub.s32 %v849, %v953
    %v955 = vrot.slane %v776, %v954
    %v956 = vsel %vm854, %v955, %v951
    %v957 = vlaneseq
    %v958 = vshrl.u32 %v957, 7
    %v959 = vsub.s32 %v856, %v958
    %v960 = vrot.slane %v777, %v959
    %v961 = vsel %vm861, %v960, %v956
    %v962 = vlaneseq
    %v963 = vshrl.u32 %v962, 7
    %v964 = vsub.s32 %v863, %v963
    %v965 = vrot.slane %v778, %v964
    %v966 = vsel %vm868, %v965, %v961
    %v967 = vlaneseq
    %v968 = vshrl.u32 %v967, 7
    %v969 = vsub.s32 %v870, %v968
    %v970 = vrot.slane %v779, %v969
    %v971 = vsel %vm875, %v970, %v966
    %v972 = vlaneseq
    %v973 = vshrl.u32 %v972, 7
    %v974 = vsub.s32 %v877, %v973
    %v975 = vrot.slane %v780, %v974
    %v976 = vsel %vm882, %v975, %v971
    %v977 = vlaneseq
    %v978 = vshrl.u32 %v977, 7
    %v979 = vsub.s32 %v884, %v978
    %v980 = vrot.slane %v781, %v979
    %v981 = vsel %vm889, %v980, %v976
    %v982 = vlaneseq
    %v983 = vshrl.u32 %v982, 7
    %v984 = vsub.s32 %v891, %v983
    %v985 = vrot.slane %v782, %v984
    %v986 = vsel %vm896, %v985, %v981
    %v987 = vlaneseq
    %v988 = vshrl.u32 %v987, 7
    %v989 = vsub.s32 %v898, %v988
    %v990 = vrot.slane %v783, %v989
    %v991 = vsel %vm903, %v990, %v986
    %v992 = vlaneseq
    %v993 = vshrl.u32 %v992, 7
    %v994 = vsub.s32 %v905, %v993
    %v995 = vrot.slane %v784, %v994
    %v996 = vsel %vm910, %v995, %v991
    %v997 = vlaneseq
    %v998 = vshrl.u32 %v997, 7
    %v999 = vsub.s32 %v912, %v998
    %v1000 = vrot.slane %v785, %v999
    %v1001 = vsel %vm917, %v1000, %v996
    %v1002 = vlaneseq
    %v1003 = vshrl.u32 %v1002, 7
    %v1004 = vsub.s32 %v919, %v1003
    %v1005 = vrot.slane %v786, %v1004
    %v1006 = vsel %vm924, %v1005, %v1001
    %v1007 = vlaneseq
    %v1008 = vshrl.u32 %v1007, 7
    %v1009 = vsub.s32 %v926, %v1008
    %v1010 = vrot.slane %v787, %v1009
    %v1011 = vsel %vm931, %v1010, %v1006
    %vm1012 = vcmask 1041409
    %v1013 = vsel %vm1012, %v1011, %v932
    %v1015 = vmul.f32 %v791, %v1013
    %vm1016 = vcmask 1041408
    %v1017 = vsel %vm1016, %v1015, 0.0
    %1018 = vadd.xlane.f32.xlu0 %v1017
    %v1019 = vpop.xlane.xlu0 %1018
    %v1020 = vsel %vm1016, %v791, 0.0
    %1021 = vadd.xlane.f32.xlu0 %v1020
    %v1022 = vpop.xlane.xlu0 %1021
    %v1023 = vld [vmem:[%s4] sm:$0x3]
    %s1024 = scalar_lea.vmem %s4, 2
    %v1025 = vld [vmem:[%s1024] sm:$0x3]
    %s1026 = scalar_lea.vmem %s4, 4
    %v1027 = vld [vmem:[%s1026] sm:$0x3]
    %s1028 = scalar_lea.vmem %s4, 6
    %v1029 = vld [vmem:[%s1028] sm:$0x3]
    %v1030 = vld [vmem:[%s5] sm:$0x3]
    %s1031 = scalar_lea.vmem %s5, 2
    %v1032 = vld [vmem:[%s1031] sm:$0x3]
    %s1033 = scalar_lea.vmem %s5, 4
    %v1034 = vld [vmem:[%s1033] sm:$0x3]
    %s1035 = scalar_lea.vmem %s5, 6
    %v1036 = vld [vmem:[%s1035] sm:$0x3]
    %vm1037 = vcmp.ne.s32.totalorder %v44, 0
    %v1038 = vsel %vm1037, 1, 0
    %v1039 = vcvt.s32.f32 %v1038
    %v1040 = vmul.f32 %v1039, %v43
    %v1041 = vmul.f32 %v1027, 0.5
    %v1042 = vsub.f32 %v1023, %v1041
    %v1043 = vmul.f32 %v1029, 0.5
    %v1044 = vsub.f32 %v1025, %v1043
    %v1045 = vadd.f32 %v1023, %v1041
    %v1046 = vadd.f32 %v1025, %v1043
    %v1047 = vmul.f32 %v1034, 0.5
    %v1048 = vsub.f32 %v1030, %v1047
    %v1049 = vmul.f32 %v1036, 0.5
    %v1050 = vsub.f32 %v1032, %v1049
    %v1051 = vadd.f32 %v1030, %v1047
    %v1052 = vadd.f32 %v1032, %v1049
    %v1053 = vsub.f32 %v1045, %v1042
    %v1054 = vsub.f32 %v1046, %v1044
    %v1055 = vmul.f32 %v1053, %v1054
    %v1056 = vsub.f32 %v1051, %v1048
    %v1057 = vsub.f32 %v1052, %v1050
    %v1058 = vmul.f32 %v1056, %v1057
    %v1059 = vmin.f32 %v1045, %v1051
    %v1060 = vmax.f32 %v1042, %v1048
    %v1061 = vsub.f32 %v1059, %v1060
    %v1062 = vmax.f32 %v1061, 0.0
    %v1063 = vmin.f32 %v1046, %v1052
    %v1064 = vmax.f32 %v1044, %v1050
    %v1065 = vsub.f32 %v1063, %v1064
    %v1066 = vmax.f32 %v1065, 0.0
    %v1067 = vmul.f32 %v1062, %v1066
    %v1068 = vadd.f32 %v1055, %v1058
    %v1069 = vsub.f32 %v1068, %v1067
    %v1070 = vmax.f32 %v1045, %v1051
    %v1071 = vmin.f32 %v1042, %v1048
    %v1072 = vsub.f32 %v1070, %v1071
    %v1073 = vmax.f32 %v1046, %v1052
    %v1074 = vmin.f32 %v1044, %v1050
    %v1075 = vsub.f32 %v1073, %v1074
    %v1076 = vmul.f32 %v1072, %v1075
    %v1077 = vrcp.pop %v1069
    %v1078 = vmul.f32 %v1067, %v1077
    %v1079 = vsub.f32 %v1076, %v1069
    %v1080 = vrcp.pop %v1076
    %v1081 = vmul.f32 %v1079, %v1080
    %v1082 = vsub.f32 %v1078, %v1081
    %v1083 = vsub.f32 1.0, %v1082
    %v1084 = vmul.f32 %v1083, %v1040
    %v1085 = vsel %vm1016, %v1084, 0.0
    %1086 = vadd.xlane.f32.xlu0 %v1085
    %v1087 = vpop.xlane.xlu0 %1086
    %v1088 = vsub.f32 %v1023, %v1030
    %v1089 = vand.u32 2147483647, %v1088
    %v1090 = vsub.f32 %v1025, %v1032
    %v1091 = vand.u32 2147483647, %v1090
    %v1092 = vadd.f32 %v1089, %v1091
    %v1093 = vsub.f32 %v1027, %v1034
    %v1094 = vand.u32 2147483647, %v1093
    %v1095 = vadd.f32 %v1092, %v1094
    %v1096 = vsub.f32 %v1029, %v1036
    %v1097 = vand.u32 2147483647, %v1096
    %v1098 = vadd.f32 %v1095, %v1097
    %v1099 = vmul.f32 %v1098, 0.25
    %v1100 = vmul.f32 %v1099, %v1040
    %v1101 = vsel %vm1016, %v1100, 0.0
    %1102 = vadd.xlane.f32.xlu0 %v1101
    %v1103 = vpop.xlane.xlu0 %1102
    %v1104 = vsel %vm1016, %v1040, 0.0
    %1105 = vadd.xlane.f32.xlu0 %v1104
    %v1106 = vpop.xlane.xlu0 %1105
    %1107 = vst [vmem:[#allocation4] sm:$0x3] %v1019
    %1108 = vst [vmem:[#allocation6] sm:$0x3] %v1022
    %1109 = vst [vmem:[#allocation8] sm:$0x3] %v1087
    %1110 = vst [vmem:[#allocation9] sm:$0x3] %v1103
    %1111 = vst [vmem:[#allocation11] sm:$0x3] %v1106
    // Predicated region
    $region26: #{tpu_custom_call.1} parent=1 // pred_check
      _
    $region27: #{tpu_custom_call.1} parent=1 // pred_check_branch
      %1113 = sbr.rel (0) target = $region29
    $region28: #{tpu_custom_call.1} parent=1 // pred_region
      %s1115 = ssub.s32 32, 32
      %1116 = vsyncadd [#allocation5], %s1115
      %s1118 = sshll.u32 [#allocation4], 4
      %s1119 = int_to_ptr.vmem [resolvable:$true] %s1118
      %1121 = dma.vmem_to_hbm [thread:$0]  %s1119, 32, %s6, [#allocation5]
    $region29: #{tpu_custom_call.1} parent=1 // pred_fallthru
      _
    // Predicated region
    $region30: #{tpu_custom_call.1} parent=1 // pred_check
      _
    $region31: #{tpu_custom_call.1} parent=1 // pred_check_branch
      %1123 = sbr.rel (0) target = $region33
    $region32: #{tpu_custom_call.1} parent=1 // pred_region
      %s1125 = ssub.s32 32, 32
      %1126 = vsyncadd [#allocation7], %s1125
      %s1128 = sshll.u32 [#allocation6], 4
      %s1129 = int_to_ptr.vmem [resolvable:$true] %s1128
      %1131 = dma.vmem_to_hbm [thread:$0]  %s1129, 32, %s7, [#allocation7]
    $region33: #{tpu_custom_call.1} parent=1 // pred_fallthru
      _
    // Predicated region
    $region34: #{tpu_custom_call.1} parent=1 // pred_check
      _
    $region35: #{tpu_custom_call.1} parent=1 // pred_check_branch
      %1133 = sbr.rel (0) target = $region37
    $region36: #{tpu_custom_call.1} parent=1 // pred_region
      %s1135 = ssub.s32 32, 32
      %1136 = vsyncadd [#allocation7], %s1135
      %s1138 = sshll.u32 [#allocation8], 4
      %s1139 = int_to_ptr.vmem [resolvable:$true] %s1138
      %1141 = dma.vmem_to_hbm [thread:$0]  %s1139, 32, %s8, [#allocation7]
    $region37: #{tpu_custom_call.1} parent=1 // pred_fallthru
      _
    // Predicated region
    $region38: #{tpu_custom_call.1} parent=1 // pred_check
      _
    $region39: #{tpu_custom_call.1} parent=1 // pred_check_branch
      %1143 = sbr.rel (0) target = $region41
    $region40: #{tpu_custom_call.1} parent=1 // pred_region
      %s1145 = ssub.s32 32, 32
      %1146 = vsyncadd [#allocation10], %s1145
      %s1148 = sshll.u32 [#allocation9], 4
      %s1149 = int_to_ptr.vmem [resolvable:$true] %s1148
      %1151 = dma.vmem_to_hbm [thread:$0]  %s1149, 32, %s9, [#allocation10]
    $region41: #{tpu_custom_call.1} parent=1 // pred_fallthru
      _
    // Predicated region
    $region42: #{tpu_custom_call.1} parent=1 // pred_check
      _
    $region43: #{tpu_custom_call.1} parent=1 // pred_check_branch
      %1153 = sbr.rel (0) target = $region45
    $region44: #{tpu_custom_call.1} parent=1 // pred_region
      %s1155 = ssub.s32 32, 32
      %1156 = vsyncadd [#allocation10], %s1155
      %s1158 = sshll.u32 [#allocation11], 4
      %s1159 = int_to_ptr.vmem [resolvable:$true] %s1158
      %1161 = dma.vmem_to_hbm [thread:$0]  %s1159, 32, %s10, [#allocation10]
    $region45: #{tpu_custom_call.1} parent=1 // pred_fallthru
      _
    // Predicated region
    $region46: #{tpu_custom_call.1} parent=1 // pred_check
      _
    $region47: #{tpu_custom_call.1} parent=1 // pred_check_branch
      %1163 = sbr.rel (0) target = $region49
    $region48: #{tpu_custom_call.1} parent=1 // pred_region
      %1164 = dma.done [#allocation5], 32
    $region49: #{tpu_custom_call.1} parent=1 // pred_fallthru
      _
    // Predicated region
    $region50: #{tpu_custom_call.1} parent=1 // pred_check
      _
    $region51: #{tpu_custom_call.1} parent=1 // pred_check_branch
      %1166 = sbr.rel (0) target = $region53
    $region52: #{tpu_custom_call.1} parent=1 // pred_region
      %1167 = dma.done [#allocation7], 32
    $region53: #{tpu_custom_call.1} parent=1 // pred_fallthru
      _
    // Predicated region
    $region54: #{tpu_custom_call.1} parent=1 // pred_check
      _
    $region55: #{tpu_custom_call.1} parent=1 // pred_check_branch
      %1169 = sbr.rel (0) target = $region57
    $region56: #{tpu_custom_call.1} parent=1 // pred_region
      %1170 = dma.done [#allocation7], 32
    $region57: #{tpu_custom_call.1} parent=1 // pred_fallthru
      _
    // Predicated region
    $region58: #{tpu_custom_call.1} parent=1 // pred_check
      _
    $region59: #{tpu_custom_call.1} parent=1 // pred_check_branch
      %1172 = sbr.rel (0) target = $region61
    $region60: #{tpu_custom_call.1} parent=1 // pred_region
      %1173 = dma.done [#allocation10], 32
    $region61: #{tpu_custom_call.1} parent=1 // pred_fallthru
      _
    // Predicated region
    $region62: #{tpu_custom_call.1} parent=1 // pred_check
      _
    $region63: #{tpu_custom_call.1} parent=1 // pred_check_branch
      %1175 = sbr.rel (0) target = $region65
    $region64: #{tpu_custom_call.1} parent=1 // pred_region
      %1176 = dma.done [#allocation10], 32
    $region65: #{tpu_custom_call.1} parent=1 // pred_fallthru
      _
    %1177 = vsyncpa [#allocation5], 1
    %1178 = vsyncpa [#allocation7], 1
    %1179 = vsyncpa [#allocation10], 1

</llo_original>
